<compile_context>
chip_gen: v7x
topology: tpu7x:2x2x1
jax: 0.10.0
libtpu: 0.0.40
codegen_flags: <defaults>
</compile_context>

<pallas_src>
import numpy as np
import jax
import jax.numpy as jnp
from jax.experimental import pallas as pl
from jax.experimental.pallas import tpu as pltpu

# Static problem sizes (pools (1,3,3) and (1,1,3) require H % 3 == 0, W % 9 == 0).
N, D, H, W = 2, 4, 9, 18
H3, W3 = H // 3, W // 3          # after MaxPool3d((1, 3, 3))
W9 = W3 // 3                     # after MaxPool3d((1, 1, 3))
C1, C2 = 8, 16                   # encoder channel widths
SP = N * D * H3 * W3             # 144: flattened (n, d, h3, w3) spatial grid
K1 = 32                          # conv1 contraction dim (27 taps zero-padded to 32)
PADC = 32                        # lane padding used for in-kernel shifted slices


def _conv2_constants():
    """Per-lane validity masks for the 27 conv2 taps and the pool-2 / decoder-1 selector."""
    cols = np.arange(SP)
    r = cols % (D * H3 * W3)
    d_i = r // (H3 * W3)
    h_i = (r % (H3 * W3)) // W3
    w_i = r % W3
    masks = np.zeros((27, SP), np.float32)
    t = 0
    for kd in (-1, 0, 1):
        for kh in (-1, 0, 1):
            for kw in (-1, 0, 1):
                valid = ((d_i + kd >= 0) & (d_i + kd < D) &
                         (h_i + kh >= 0) & (h_i + kh < H3) &
                         (w_i + kw >= 0) & (w_i + kw < W3))
                masks[t] = valid.astype(np.float32)
                t += 1
    sel = np.zeros((3, SP), np.float32)
    for j in range(3):
        sel[j] = (w_i % 3 == j).astype(np.float32)
    return masks, sel


CONV2_MASKS, POOL2_SEL = _conv2_constants()


def cnn_ae_kernel(pat_ref, w1_ref, b1_ref, w2_ref, b2_ref, msk_ref, sel_ref,
                  wd1_ref, bd1_ref, wd2_ref, bd2_ref, out_ref):
    f32 = jnp.float32

    # ---- encoder stage 1: Conv3d(1, 8, k=3, pad=1) + ReLU (one MXU matmul) ----------
    # columns of pat/h1 are ordered (hh, ww, n, d, h3, w3), (hh, ww) = position inside
    # the 3x3 pooling window, so the pool below reduces 9 contiguous 144-lane chunks.
    h1 = jnp.dot(w1_ref[...], pat_ref[...], preferred_element_type=f32)   # (8, 1296)
    h1 = jnp.maximum(h1 + b1_ref[...], 0.0)

    # ---- MaxPool3d((1, 3, 3)) --------------------------------------------------------
    p = h1[:, 0:SP]
    for j in range(1, 9):
        p = jnp.maximum(p, h1[:, j * SP:(j + 1) * SP])                    # (8, 144)

    # ---- encoder stage 2: Conv3d(8, 16, k=3, pad=1) + ReLU ---------------------------
    # in-kernel im2col: each tap is a constant lane shift of p, zeroed at the
    # (d, h3, w3) volume boundaries by a precomputed per-lane mask.
    zpad1 = jnp.zeros((C1, PADC), f32)
    p_wide = jnp.concatenate([zpad1, p, zpad1], axis=1)                   # (8, 208)
    taps = []
    t = 0
    for kd in (-1, 0, 1):
        for kh in (-1, 0, 1):
            for kw in (-1, 0, 1):
                delta = kd * (H3 * W3) + kh * W3 + kw
                shifted = p_wide[:, PADC + delta:PADC + delta + SP]       # (8, 144)
                taps.append(shifted * msk_ref[t:t + 1, :])
                t += 1
    patches2 = jnp.concatenate(taps, axis=0)                              # (216, 144)
    h2 = jnp.dot(w2_ref[...], patches2, preferred_element_type=f32)       # (16, 144)
    h2 = jnp.maximum(h2 + b2_ref[...], 0.0)

    # ---- MaxPool3d((1, 1, 3)), kept "expanded" over its 3-wide window ----------------
    zpad2 = jnp.zeros((C2, PADC), f32)
    h2w = jnp.concatenate([zpad2, h2, zpad2], axis=1)                     # (16, 208)
    sh = lambda d: h2w[:, PADC + d:PADC + d + SP]
    m0 = jnp.maximum(jnp.maximum(h2, sh(1)), sh(2))      # window aligned at w3 % 3 == 0
    m1 = jnp.maximum(jnp.maximum(sh(-1), h2), sh(1))     # w3 % 3 == 1
    m2 = jnp.maximum(jnp.maximum(sh(-2), sh(-1)), h2)    # w3 % 3 == 2
    e0 = sel_ref[0:1, :]
    e1 = sel_ref[1:2, :]
    e2 = sel_ref[2:3, :]
    z_exp = m0 * e0 + m1 * e1 + m2 * e2                  # pooled max, replicated (16, 144)

    # ---- decoder stage 1: ConvTranspose3d(16, 8, (1,1,3), stride=(1,1,3)) + ReLU -----
    # one matmul computes all 3 kw1 taps; the selector picks kw1 = w3 % 3 per column.
    y_all = jnp.dot(wd1_ref[...], z_exp, preferred_element_type=f32)      # (24, 144)
    y_all = jnp.maximum(y_all + bd1_ref[...], 0.0)
    y = (y_all[0:C1] * e0 + y_all[C1:2 * C1] * e1 + y_all[2 * C1:3 * C1] * e2)  # (8, 144)

    # ---- decoder stage 2: ConvTranspose3d(8, 1, (1,3,3), stride=(1,3,3)) + Sigmoid ---
    o = jnp.dot(wd2_ref[...], y, preferred_element_type=f32) + bd2_ref[...]     # (9, 144)
    out_ref[...] = jax.nn.sigmoid(o)                      # single dense lane-wide store


@jax.jit
def cnn_ae_forward(x_ncdhw, params):
    w1mat, b1, w2mat, b2, wd1mat, bd1, wd2mat, bd2 = params
    x = x_ncdhw[:, 0].astype(jnp.float32)                    # (N, D, H, W)

    # im2col for conv1 (pure layout plumbing of the kernel input).  Column order is
    # (hh, ww, n, d, h3, w3) so the in-kernel (1,3,3) pool is a max over 9 chunks.
    xp = jnp.pad(x, ((0, 0), (1, 1), (1, 1), (1, 1)))
    taps = [xp[:, kd:kd + D, kh:kh + H, kw:kw + W]
            for kd in range(3) for kh in range(3) for kw in range(3)]
    pat = jnp.stack(taps, axis=0)                             # (27, N, D, H, W)
    pat = pat.reshape(27, N, D, H3, 3, W3, 3)                 # (27, n, d, h3, hh, w3, ww)
    pat = pat.transpose(0, 4, 6, 1, 2, 3, 5)                  # (27, hh, ww, n, d, h3, w3)
    pat = pat.reshape(27, 9 * SP)
    pat = jnp.concatenate([pat, jnp.zeros((K1 - 27, 9 * SP), jnp.float32)], axis=0)

    out = pl.pallas_call(
        cnn_ae_kernel,
        out_shape=jax.ShapeDtypeStruct((9, SP), jnp.float32),
        in_specs=[pl.BlockSpec(memory_space=pltpu.MemorySpace.VMEM)] * 11,
        out_specs=pl.BlockSpec(memory_space=pltpu.MemorySpace.VMEM),
    )(pat, w1mat, b1, w2mat, b2,
      jnp.asarray(CONV2_MASKS), jnp.asarray(POOL2_SEL),
      wd1mat, bd1, wd2mat, bd2)

    # glue: scatter the (kh, kw2) transpose-conv taps back to spatial positions.
    o = out.reshape(3, 3, N, D, H3, W3)                       # (kh, kw2, n, d, h3, w3)
    o = o.transpose(2, 3, 4, 0, 5, 1)                         # (n, d, h3, kh, w3, kw2)
    o = o.reshape(N, D, H, W)                                 # H = 3*h3+kh, W = 3*w3+kw2
    return o[:, None, :, :, :]                                # (N, 1, D, H, W)


def reference_forward(x_ncdhw, raw):
    """Pure-JAX/XLA reference matching the PyTorch forward."""
    w1, b1, w2, b2, wd1, bd1, wd2, bd2 = raw
    x = jnp.transpose(x_ncdhw, (0, 2, 3, 4, 1))     # NDHWC
    dn = ('NDHWC', 'DHWIO', 'NDHWC')
    h = jax.lax.conv_general_dilated(x, jnp.transpose(w1, (2, 3, 4, 1, 0)),
                                     (1, 1, 1), 'SAME', dimension_numbers=dn) + b1
    h = jax.nn.relu(h)
    h = jax.lax.reduce_window(h, -jnp.inf, jax.lax.max, (1, 1, 3, 3, 1), (1, 1, 3, 3, 1), 'VALID')
    h = jax.lax.conv_general_dilated(h, jnp.transpose(w2, (2, 3, 4, 1, 0)),
                                     (1, 1, 1), 'SAME', dimension_numbers=dn) + b2
    h = jax.nn.relu(h)
    z = jax.lax.reduce_window(h, -jnp.inf, jax.lax.max, (1, 1, 1, 3, 1), (1, 1, 1, 3, 1), 'VALID')
    # ConvTranspose3d(16, 8, (1,1,3), stride=(1,1,3))  (kernel == stride)
    Wt1 = wd1[:, :, 0, 0, :]                                          # (ci, co, kw)
    y = jnp.einsum('ndhwi,iok->ndhwko', z, Wt1)
    y = y.reshape(z.shape[0], z.shape[1], z.shape[2], z.shape[3] * 3, C1) + bd1
    y = jax.nn.relu(y)
    # ConvTranspose3d(8, 1, (1,3,3), stride=(1,3,3))
    Wt2 = wd2[:, :, 0, :, :]                                          # (ci, co, kh, kw)
    o = jnp.einsum('ndhwi,iokl->ndhkwlo', y, Wt2)
    o = o.reshape(y.shape[0], y.shape[1], y.shape[2] * 3, y.shape[3] * 3, 1) + bd2
    o = jax.nn.sigmoid(o)
    return jnp.transpose(o, (0, 4, 1, 2, 3))                          # (N,1,D,H,W)


if __name__ == "__main__":
    key = jax.random.PRNGKey(0)
    ks = jax.random.split(key, 9)

    def u(k, shape, scale):
        return jax.random.uniform(k, shape, jnp.float32, -scale, scale)

    # Deterministic synthetic parameters in native PyTorch shapes
    # (Conv3d: (Cout, Cin, kD, kH, kW); ConvTranspose3d: (Cin, Cout, kD, kH, kW)).
    w1_t = u(ks[0], (C1, 1, 3, 3, 3), 0.2)
    b1_t = u(ks[1], (C1,), 0.2)
    w2_t = u(ks[2], (C2, C1, 3, 3, 3), 0.1)
    b2_t = u(ks[3], (C2,), 0.1)
    wd1_t = u(ks[4], (C2, C1, 1, 1, 3), 0.1)
    bd1_t = u(ks[5], (C1,), 0.1)
    wd2_t = u(ks[6], (C1, 1, 1, 3, 3), 0.2)
    bd2_t = u(ks[7], (1,), 0.2)
    x = jax.random.uniform(ks[8], (N, 1, D, H, W), jnp.float32)

    # Rearranged for the lane-dense (channel-rows x flattened-spatial-lanes) kernel.
    w1mat = jnp.concatenate(
        [w1_t.reshape(C1, 27), jnp.zeros((C1, K1 - 27), jnp.float32)], axis=1)     # (8, 32)
    w2mat = jnp.transpose(w2_t, (0, 2, 3, 4, 1)).reshape(C2, 27 * C1)              # (16, 216)
    wd1mat = jnp.transpose(wd1_t[:, :, 0, 0, :], (2, 1, 0)).reshape(3 * C1, C2)    # (24, 16)
    wd2mat = jnp.transpose(wd2_t[:, 0, 0, :, :], (1, 2, 0)).reshape(9, C1)         # (9, 8)
    params = (
        w1mat,
        b1_t.reshape(C1, 1),
        w2mat,
        b2_t.reshape(C2, 1),
        wd1mat,
        jnp.tile(bd1_t.reshape(1, C1), (3, 1)).reshape(3 * C1, 1),                 # (24, 1)
        wd2mat,
        bd2_t.reshape(1, 1),
    )

    out = jax.block_until_ready(cnn_ae_forward(x, params))
    assert out.shape == (N, 1, D, H, W), out.shape

    ref = reference_forward(x, (w1_t, b1_t, w2_t, b2_t, wd1_t, bd1_t, wd2_t, bd2_t))
    # Tolerance allows for MXU multi-pass f32 matmul vs. XLA conv accumulation-order
    # differences; real indexing/layout bugs produce errors orders of magnitude larger.
    np.testing.assert_allclose(np.asarray(out), np.asarray(ref), rtol=1e-3, atol=1e-3)
    print("KERNEL_OK")
</pallas_src>

<mosaic_0001>
module attributes {stable_mosaic.version = 11 : i64} {
  func.func @cnn_ae_kernel(%arg0: memref<32x1296xf32, #tpu.memory_space<vmem>>, %arg1: memref<8x32xf32, #tpu.memory_space<vmem>>, %arg2: memref<8x1xf32, #tpu.memory_space<vmem>>, %arg3: memref<16x216xf32, #tpu.memory_space<vmem>>, %arg4: memref<16x1xf32, #tpu.memory_space<vmem>>, %arg5: memref<27x144xf32, #tpu.memory_space<vmem>>, %arg6: memref<3x144xf32, #tpu.memory_space<vmem>>, %arg7: memref<24x16xf32, #tpu.memory_space<vmem>>, %arg8: memref<24x1xf32, #tpu.memory_space<vmem>>, %arg9: memref<9x8xf32, #tpu.memory_space<vmem>>, %arg10: memref<1x1xf32, #tpu.memory_space<vmem>>, %arg11: memref<9x144xf32, #tpu.memory_space<vmem>>) attributes {dimension_semantics = [], scalar_prefetch = 0 : i64, scratch_operands = 0 : i64, tpu.core_type = #tpu.core_type<tc>} {
    %c0 = arith.constant 0 : index
    %c0_0 = arith.constant 0 : index
    %0 = vector.load %arg1[%c0, %c0_0] : memref<8x32xf32, #tpu.memory_space<vmem>>, vector<8x32xf32>
    %c0_1 = arith.constant 0 : index
    %c0_2 = arith.constant 0 : index
    %1 = vector.load %arg0[%c0_1, %c0_2] : memref<32x1296xf32, #tpu.memory_space<vmem>>, vector<32x1296xf32>
    %cst = arith.constant dense<0.000000e+00> : vector<8x1296xf32>
    %2 = tpu.matmul %0, %1, %cst {dimension_numbers = #tpu.dot_dimension_numbers<[1], [0], [0], [1], [0, 0, 1, 1], [], []>} : vector<8x32xf32>, vector<32x1296xf32>, vector<8x1296xf32> -> vector<8x1296xf32>
    %c0_3 = arith.constant 0 : index
    %c0_4 = arith.constant 0 : index
    %3 = vector.load %arg2[%c0_3, %c0_4] : memref<8x1xf32, #tpu.memory_space<vmem>>, vector<8x1xf32>
    %4 = vector.broadcast %3 : vector<8x1xf32> to vector<8x1296xf32>
    %5 = arith.addf %2, %4 : vector<8x1296xf32>
    %cst_5 = arith.constant 0.000000e+00 : f32
    %6 = vector.broadcast %cst_5 : f32 to vector<8x1296xf32>
    %7 = arith.maximumf %5, %6 : vector<8x1296xf32>
    %8 = vector.extract_strided_slice %7 {offsets = [0, 0], sizes = [8, 144], strides = [1, 1]} : vector<8x1296xf32> to vector<8x144xf32>
    %9 = vector.extract_strided_slice %7 {offsets = [0, 144], sizes = [8, 144], strides = [1, 1]} : vector<8x1296xf32> to vector<8x144xf32>
    %10 = arith.maximumf %8, %9 : vector<8x144xf32>
    %11 = vector.extract_strided_slice %7 {offsets = [0, 288], sizes = [8, 144], strides = [1, 1]} : vector<8x1296xf32> to vector<8x144xf32>
    %12 = arith.maximumf %10, %11 : vector<8x144xf32>
    %13 = vector.extract_strided_slice %7 {offsets = [0, 432], sizes = [8, 144], strides = [1, 1]} : vector<8x1296xf32> to vector<8x144xf32>
    %14 = arith.maximumf %12, %13 : vector<8x144xf32>
    %15 = vector.extract_strided_slice %7 {offsets = [0, 576], sizes = [8, 144], strides = [1, 1]} : vector<8x1296xf32> to vector<8x144xf32>
    %16 = arith.maximumf %14, %15 : vector<8x144xf32>
    %17 = vector.extract_strided_slice %7 {offsets = [0, 720], sizes = [8, 144], strides = [1, 1]} : vector<8x1296xf32> to vector<8x144xf32>
    %18 = arith.maximumf %16, %17 : vector<8x144xf32>
    %19 = vector.extract_strided_slice %7 {offsets = [0, 864], sizes = [8, 144], strides = [1, 1]} : vector<8x1296xf32> to vector<8x144xf32>
    %20 = arith.maximumf %18, %19 : vector<8x144xf32>
    %21 = vector.extract_strided_slice %7 {offsets = [0, 1008], sizes = [8, 144], strides = [1, 1]} : vector<8x1296xf32> to vector<8x144xf32>
    %22 = arith.maximumf %20, %21 : vector<8x144xf32>
    %23 = vector.extract_strided_slice %7 {offsets = [0, 1152], sizes = [8, 144], strides = [1, 1]} : vector<8x1296xf32> to vector<8x144xf32>
    %24 = arith.maximumf %22, %23 : vector<8x144xf32>
    %cst_6 = arith.constant 0.000000e+00 : f32
    %25 = vector.broadcast %cst_6 : f32 to vector<8x32xf32>
    %26 = tpu.concatenate %25, %24, %25 in 1 : vector<8x32xf32>, vector<8x144xf32>, vector<8x32xf32> -> vector<8x208xf32>
    %27 = vector.extract_strided_slice %26 {offsets = [0, 7], sizes = [8, 144], strides = [1, 1]} : vector<8x208xf32> to vector<8x144xf32>
    %c0_7 = arith.constant 0 : index
    %c0_8 = arith.constant 0 : index
    %28 = vector.load %arg5[%c0_7, %c0_8] : memref<27x144xf32, #tpu.memory_space<vmem>>, vector<1x144xf32>
    %29 = vector.broadcast %28 : vector<1x144xf32> to vector<8x144xf32>
    %30 = arith.mulf %27, %29 : vector<8x144xf32>
    %31 = vector.extract_strided_slice %26 {offsets = [0, 8], sizes = [8, 144], strides = [1, 1]} : vector<8x208xf32> to vector<8x144xf32>
    %c1 = arith.constant 1 : index
    %c0_9 = arith.constant 0 : index
    %32 = vector.load %arg5[%c1, %c0_9] : memref<27x144xf32, #tpu.memory_space<vmem>>, vector<1x144xf32>
    %33 = vector.broadcast %32 : vector<1x144xf32> to vector<8x144xf32>
    %34 = arith.mulf %31, %33 : vector<8x144xf32>
    %35 = vector.extract_strided_slice %26 {offsets = [0, 9], sizes = [8, 144], strides = [1, 1]} : vector<8x208xf32> to vector<8x144xf32>
    %c2 = arith.constant 2 : index
    %c0_10 = arith.constant 0 : index
    %36 = vector.load %arg5[%c2, %c0_10] : memref<27x144xf32, #tpu.memory_space<vmem>>, vector<1x144xf32>
    %37 = vector.broadcast %36 : vector<1x144xf32> to vector<8x144xf32>
    %38 = arith.mulf %35, %37 : vector<8x144xf32>
    %39 = vector.extract_strided_slice %26 {offsets = [0, 13], sizes = [8, 144], strides = [1, 1]} : vector<8x208xf32> to vector<8x144xf32>
    %c3 = arith.constant 3 : index
    %c0_11 = arith.constant 0 : index
    %40 = vector.load %arg5[%c3, %c0_11] : memref<27x144xf32, #tpu.memory_space<vmem>>, vector<1x144xf32>
    %41 = vector.broadcast %40 : vector<1x144xf32> to vector<8x144xf32>
    %42 = arith.mulf %39, %41 : vector<8x144xf32>
    %43 = vector.extract_strided_slice %26 {offsets = [0, 14], sizes = [8, 144], strides = [1, 1]} : vector<8x208xf32> to vector<8x144xf32>
    %c4 = arith.constant 4 : index
    %c0_12 = arith.constant 0 : index
    %44 = vector.load %arg5[%c4, %c0_12] : memref<27x144xf32, #tpu.memory_space<vmem>>, vector<1x144xf32>
    %45 = vector.broadcast %44 : vector<1x144xf32> to vector<8x144xf32>
    %46 = arith.mulf %43, %45 : vector<8x144xf32>
    %47 = vector.extract_strided_slice %26 {offsets = [0, 15], sizes = [8, 144], strides = [1, 1]} : vector<8x208xf32> to vector<8x144xf32>
    %c5 = arith.constant 5 : index
    %c0_13 = arith.constant 0 : index
    %48 = vector.load %arg5[%c5, %c0_13] : memref<27x144xf32, #tpu.memory_space<vmem>>, vector<1x144xf32>
    %49 = vector.broadcast %48 : vector<1x144xf32> to vector<8x144xf32>
    %50 = arith.mulf %47, %49 : vector<8x144xf32>
    %51 = vector.extract_strided_slice %26 {offsets = [0, 19], sizes = [8, 144], strides = [1, 1]} : vector<8x208xf32> to vector<8x144xf32>
    %c6 = arith.constant 6 : index
    %c0_14 = arith.constant 0 : index
    %52 = vector.load %arg5[%c6, %c0_14] : memref<27x144xf32, #tpu.memory_space<vmem>>, vector<1x144xf32>
    %53 = vector.broadcast %52 : vector<1x144xf32> to vector<8x144xf32>
    %54 = arith.mulf %51, %53 : vector<8x144xf32>
    %55 = vector.extract_strided_slice %26 {offsets = [0, 20], sizes = [8, 144], strides = [1, 1]} : vector<8x208xf32> to vector<8x144xf32>
    %c7 = arith.constant 7 : index
    %c0_15 = arith.constant 0 : index
    %56 = vector.load %arg5[%c7, %c0_15] : memref<27x144xf32, #tpu.memory_space<vmem>>, vector<1x144xf32>
    %57 = vector.broadcast %56 : vector<1x144xf32> to vector<8x144xf32>
    %58 = arith.mulf %55, %57 : vector<8x144xf32>
    %59 = vector.extract_strided_slice %26 {offsets = [0, 21], sizes = [8, 144], strides = [1, 1]} : vector<8x208xf32> to vector<8x144xf32>
    %c8 = arith.constant 8 : index
    %c0_16 = arith.constant 0 : index
    %60 = vector.load %arg5[%c8, %c0_16] : memref<27x144xf32, #tpu.memory_space<vmem>>, vector<1x144xf32>
    %61 = vector.broadcast %60 : vector<1x144xf32> to vector<8x144xf32>
    %62 = arith.mulf %59, %61 : vector<8x144xf32>
    %63 = vector.extract_strided_slice %26 {offsets = [0, 25], sizes = [8, 144], strides = [1, 1]} : vector<8x208xf32> to vector<8x144xf32>
    %c9 = arith.constant 9 : index
    %c0_17 = arith.constant 0 : index
    %64 = vector.load %arg5[%c9, %c0_17] : memref<27x144xf32, #tpu.memory_space<vmem>>, vector<1x144xf32>
    %65 = vector.broadcast %64 : vector<1x144xf32> to vector<8x144xf32>
    %66 = arith.mulf %63, %65 : vector<8x144xf32>
    %67 = vector.extract_strided_slice %26 {offsets = [0, 26], sizes = [8, 144], strides = [1, 1]} : vector<8x208xf32> to vector<8x144xf32>
    %c10 = arith.constant 10 : index
    %c0_18 = arith.constant 0 : index
    %68 = vector.load %arg5[%c10, %c0_18] : memref<27x144xf32, #tpu.memory_space<vmem>>, vector<1x144xf32>
    %69 = vector.broadcast %68 : vector<1x144xf32> to vector<8x144xf32>
    %70 = arith.mulf %67, %69 : vector<8x144xf32>
    %71 = vector.extract_strided_slice %26 {offsets = [0, 27], sizes = [8, 144], strides = [1, 1]} : vector<8x208xf32> to vector<8x144xf32>
    %c11 = arith.constant 11 : index
    %c0_19 = arith.constant 0 : index
    %72 = vector.load %arg5[%c11, %c0_19] : memref<27x144xf32, #tpu.memory_space<vmem>>, vector<1x144xf32>
    %73 = vector.broadcast %72 : vector<1x144xf32> to vector<8x144xf32>
    %74 = arith.mulf %71, %73 : vector<8x144xf32>
    %75 = vector.extract_strided_slice %26 {offsets = [0, 31], sizes = [8, 144], strides = [1, 1]} : vector<8x208xf32> to vector<8x144xf32>
    %c12 = arith.constant 12 : index
    %c0_20 = arith.constant 0 : index
    %76 = vector.load %arg5[%c12, %c0_20] : memref<27x144xf32, #tpu.memory_space<vmem>>, vector<1x144xf32>
    %77 = vector.broadcast %76 : vector<1x144xf32> to vector<8x144xf32>
    %78 = arith.mulf %75, %77 : vector<8x144xf32>
    %79 = vector.extract_strided_slice %26 {offsets = [0, 32], sizes = [8, 144], strides = [1, 1]} : vector<8x208xf32> to vector<8x144xf32>
    %c13 = arith.constant 13 : index
    %c0_21 = arith.constant 0 : index
    %80 = vector.load %arg5[%c13, %c0_21] : memref<27x144xf32, #tpu.memory_space<vmem>>, vector<1x144xf32>
    %81 = vector.broadcast %80 : vector<1x144xf32> to vector<8x144xf32>
    %82 = arith.mulf %79, %81 : vector<8x144xf32>
    %83 = vector.extract_strided_slice %26 {offsets = [0, 33], sizes = [8, 144], strides = [1, 1]} : vector<8x208xf32> to vector<8x144xf32>
    %c14 = arith.constant 14 : index
    %c0_22 = arith.constant 0 : index
    %84 = vector.load %arg5[%c14, %c0_22] : memref<27x144xf32, #tpu.memory_space<vmem>>, vector<1x144xf32>
    %85 = vector.broadcast %84 : vector<1x144xf32> to vector<8x144xf32>
    %86 = arith.mulf %83, %85 : vector<8x144xf32>
    %87 = vector.extract_strided_slice %26 {offsets = [0, 37], sizes = [8, 144], strides = [1, 1]} : vector<8x208xf32> to vector<8x144xf32>
    %c15 = arith.constant 15 : index
    %c0_23 = arith.constant 0 : index
    %88 = vector.load %arg5[%c15, %c0_23] : memref<27x144xf32, #tpu.memory_space<vmem>>, vector<1x144xf32>
    %89 = vector.broadcast %88 : vector<1x144xf32> to vector<8x144xf32>
    %90 = arith.mulf %87, %89 : vector<8x144xf32>
    %91 = vector.extract_strided_slice %26 {offsets = [0, 38], sizes = [8, 144], strides = [1, 1]} : vector<8x208xf32> to vector<8x144xf32>
    %c16 = arith.constant 16 : index
    %c0_24 = arith.constant 0 : index
    %92 = vector.load %arg5[%c16, %c0_24] : memref<27x144xf32, #tpu.memory_space<vmem>>, vector<1x144xf32>
    %93 = vector.broadcast %92 : vector<1x144xf32> to vector<8x144xf32>
    %94 = arith.mulf %91, %93 : vector<8x144xf32>
    %95 = vector.extract_strided_slice %26 {offsets = [0, 39], sizes = [8, 144], strides = [1, 1]} : vector<8x208xf32> to vector<8x144xf32>
    %c17 = arith.constant 17 : index
    %c0_25 = arith.constant 0 : index
    %96 = vector.load %arg5[%c17, %c0_25] : memref<27x144xf32, #tpu.memory_space<vmem>>, vector<1x144xf32>
    %97 = vector.broadcast %96 : vector<1x144xf32> to vector<8x144xf32>
    %98 = arith.mulf %95, %97 : vector<8x144xf32>
    %99 = vector.extract_strided_slice %26 {offsets = [0, 43], sizes = [8, 144], strides = [1, 1]} : vector<8x208xf32> to vector<8x144xf32>
    %c18 = arith.constant 18 : index
    %c0_26 = arith.constant 0 : index
    %100 = vector.load %arg5[%c18, %c0_26] : memref<27x144xf32, #tpu.memory_space<vmem>>, vector<1x144xf32>
    %101 = vector.broadcast %100 : vector<1x144xf32> to vector<8x144xf32>
    %102 = arith.mulf %99, %101 : vector<8x144xf32>
    %103 = vector.extract_strided_slice %26 {offsets = [0, 44], sizes = [8, 144], strides = [1, 1]} : vector<8x208xf32> to vector<8x144xf32>
    %c19 = arith.constant 19 : index
    %c0_27 = arith.constant 0 : index
    %104 = vector.load %arg5[%c19, %c0_27] : memref<27x144xf32, #tpu.memory_space<vmem>>, vector<1x144xf32>
    %105 = vector.broadcast %104 : vector<1x144xf32> to vector<8x144xf32>
    %106 = arith.mulf %103, %105 : vector<8x144xf32>
    %107 = vector.extract_strided_slice %26 {offsets = [0, 45], sizes = [8, 144], strides = [1, 1]} : vector<8x208xf32> to vector<8x144xf32>
    %c20 = arith.constant 20 : index
    %c0_28 = arith.constant 0 : index
    %108 = vector.load %arg5[%c20, %c0_28] : memref<27x144xf32, #tpu.memory_space<vmem>>, vector<1x144xf32>
    %109 = vector.broadcast %108 : vector<1x144xf32> to vector<8x144xf32>
    %110 = arith.mulf %107, %109 : vector<8x144xf32>
    %111 = vector.extract_strided_slice %26 {offsets = [0, 49], sizes = [8, 144], strides = [1, 1]} : vector<8x208xf32> to vector<8x144xf32>
    %c21 = arith.constant 21 : index
    %c0_29 = arith.constant 0 : index
    %112 = vector.load %arg5[%c21, %c0_29] : memref<27x144xf32, #tpu.memory_space<vmem>>, vector<1x144xf32>
    %113 = vector.broadcast %112 : vector<1x144xf32> to vector<8x144xf32>
    %114 = arith.mulf %111, %113 : vector<8x144xf32>
    %115 = vector.extract_strided_slice %26 {offsets = [0, 50], sizes = [8, 144], strides = [1, 1]} : vector<8x208xf32> to vector<8x144xf32>
    %c22 = arith.constant 22 : index
    %c0_30 = arith.constant 0 : index
    %116 = vector.load %arg5[%c22, %c0_30] : memref<27x144xf32, #tpu.memory_space<vmem>>, vector<1x144xf32>
    %117 = vector.broadcast %116 : vector<1x144xf32> to vector<8x144xf32>
    %118 = arith.mulf %115, %117 : vector<8x144xf32>
    %119 = vector.extract_strided_slice %26 {offsets = [0, 51], sizes = [8, 144], strides = [1, 1]} : vector<8x208xf32> to vector<8x144xf32>
    %c23 = arith.constant 23 : index
    %c0_31 = arith.constant 0 : index
    %120 = vector.load %arg5[%c23, %c0_31] : memref<27x144xf32, #tpu.memory_space<vmem>>, vector<1x144xf32>
    %121 = vector.broadcast %120 : vector<1x144xf32> to vector<8x144xf32>
    %122 = arith.mulf %119, %121 : vector<8x144xf32>
    %123 = vector.extract_strided_slice %26 {offsets = [0, 55], sizes = [8, 144], strides = [1, 1]} : vector<8x208xf32> to vector<8x144xf32>
    %c24 = arith.constant 24 : index
    %c0_32 = arith.constant 0 : index
    %124 = vector.load %arg5[%c24, %c0_32] : memref<27x144xf32, #tpu.memory_space<vmem>>, vector<1x144xf32>
    %125 = vector.broadcast %124 : vector<1x144xf32> to vector<8x144xf32>
    %126 = arith.mulf %123, %125 : vector<8x144xf32>
    %127 = vector.extract_strided_slice %26 {offsets = [0, 56], sizes = [8, 144], strides = [1, 1]} : vector<8x208xf32> to vector<8x144xf32>
    %c25 = arith.constant 25 : index
    %c0_33 = arith.constant 0 : index
    %128 = vector.load %arg5[%c25, %c0_33] : memref<27x144xf32, #tpu.memory_space<vmem>>, vector<1x144xf32>
    %129 = vector.broadcast %128 : vector<1x144xf32> to vector<8x144xf32>
    %130 = arith.mulf %127, %129 : vector<8x144xf32>
    %131 = vector.extract_strided_slice %26 {offsets = [0, 57], sizes = [8, 144], strides = [1, 1]} : vector<8x208xf32> to vector<8x144xf32>
    %c26 = arith.constant 26 : index
    %c0_34 = arith.constant 0 : index
    %132 = vector.load %arg5[%c26, %c0_34] : memref<27x144xf32, #tpu.memory_space<vmem>>, vector<1x144xf32>
    %133 = vector.broadcast %132 : vector<1x144xf32> to vector<8x144xf32>
    %134 = arith.mulf %131, %133 : vector<8x144xf32>
    %135 = tpu.concatenate %30, %34, %38, %42, %46, %50, %54, %58, %62, %66, %70, %74, %78, %82, %86, %90 in 0 : vector<8x144xf32>, vector<8x144xf32>, vector<8x144xf32>, vector<8x144xf32>, vector<8x144xf32>, vector<8x144xf32>, vector<8x144xf32>, vector<8x144xf32>, vector<8x144xf32>, vector<8x144xf32>, vector<8x144xf32>, vector<8x144xf32>, vector<8x144xf32>, vector<8x144xf32>, vector<8x144xf32>, vector<8x144xf32> -> vector<128x144xf32>
    %136 = tpu.concatenate %94, %98, %102, %106, %110, %114, %118, %122, %126, %130, %134 in 0 : vector<8x144xf32>, vector<8x144xf32>, vector<8x144xf32>, vector<8x144xf32>, vector<8x144xf32>, vector<8x144xf32>, vector<8x144xf32>, vector<8x144xf32>, vector<8x144xf32>, vector<8x144xf32>, vector<8x144xf32> -> vector<88x144xf32>
    %137 = tpu.concatenate %135, %136 in 0 : vector<128x144xf32>, vector<88x144xf32> -> vector<216x144xf32>
    %c0_35 = arith.constant 0 : index
    %c0_36 = arith.constant 0 : index
    %138 = vector.load %arg3[%c0_35, %c0_36] : memref<16x216xf32, #tpu.memory_space<vmem>>, vector<16x216xf32>
    %cst_37 = arith.constant dense<0.000000e+00> : vector<16x144xf32>
    %139 = tpu.matmul %138, %137, %cst_37 {dimension_numbers = #tpu.dot_dimension_numbers<[1], [0], [0], [1], [0, 0, 1, 1], [], []>} : vector<16x216xf32>, vector<216x144xf32>, vector<16x144xf32> -> vector<16x144xf32>
    %c0_38 = arith.constant 0 : index
    %c0_39 = arith.constant 0 : index
    %140 = vector.load %arg4[%c0_38, %c0_39] : memref<16x1xf32, #tpu.memory_space<vmem>>, vector<16x1xf32>
    %141 = vector.broadcast %140 : vector<16x1xf32> to vector<16x144xf32>
    %142 = arith.addf %139, %141 : vector<16x144xf32>
    %cst_40 = arith.constant 0.000000e+00 : f32
    %143 = vector.broadcast %cst_40 : f32 to vector<16x144xf32>
    %144 = arith.maximumf %142, %143 : vector<16x144xf32>
    %cst_41 = arith.constant 0.000000e+00 : f32
    %145 = vector.broadcast %cst_41 : f32 to vector<16x32xf32>
    %146 = tpu.concatenate %145, %144, %145 in 1 : vector<16x32xf32>, vector<16x144xf32>, vector<16x32xf32> -> vector<16x208xf32>
    %147 = vector.extract_strided_slice %146 {offsets = [0, 33], sizes = [16, 144], strides = [1, 1]} : vector<16x208xf32> to vector<16x144xf32>
    %148 = arith.maximumf %144, %147 : vector<16x144xf32>
    %149 = vector.extract_strided_slice %146 {offsets = [0, 34], sizes = [16, 144], strides = [1, 1]} : vector<16x208xf32> to vector<16x144xf32>
    %150 = arith.maximumf %148, %149 : vector<16x144xf32>
    %151 = vector.extract_strided_slice %146 {offsets = [0, 31], sizes = [16, 144], strides = [1, 1]} : vector<16x208xf32> to vector<16x144xf32>
    %152 = arith.maximumf %151, %144 : vector<16x144xf32>
    %153 = vector.extract_strided_slice %146 {offsets = [0, 33], sizes = [16, 144], strides = [1, 1]} : vector<16x208xf32> to vector<16x144xf32>
    %154 = arith.maximumf %152, %153 : vector<16x144xf32>
    %155 = vector.extract_strided_slice %146 {offsets = [0, 30], sizes = [16, 144], strides = [1, 1]} : vector<16x208xf32> to vector<16x144xf32>
    %156 = vector.extract_strided_slice %146 {offsets = [0, 31], sizes = [16, 144], strides = [1, 1]} : vector<16x208xf32> to vector<16x144xf32>
    %157 = arith.maximumf %155, %156 : vector<16x144xf32>
    %158 = arith.maximumf %157, %144 : vector<16x144xf32>
    %c0_42 = arith.constant 0 : index
    %c0_43 = arith.constant 0 : index
    %159 = vector.load %arg6[%c0_42, %c0_43] : memref<3x144xf32, #tpu.memory_space<vmem>>, vector<1x144xf32>
    %c1_44 = arith.constant 1 : index
    %c0_45 = arith.constant 0 : index
    %160 = vector.load %arg6[%c1_44, %c0_45] : memref<3x144xf32, #tpu.memory_space<vmem>>, vector<1x144xf32>
    %c2_46 = arith.constant 2 : index
    %c0_47 = arith.constant 0 : index
    %161 = vector.load %arg6[%c2_46, %c0_47] : memref<3x144xf32, #tpu.memory_space<vmem>>, vector<1x144xf32>
    %162 = vector.broadcast %159 : vector<1x144xf32> to vector<16x144xf32>
    %163 = arith.mulf %150, %162 : vector<16x144xf32>
    %164 = vector.broadcast %160 : vector<1x144xf32> to vector<16x144xf32>
    %165 = arith.mulf %154, %164 : vector<16x144xf32>
    %166 = arith.addf %163, %165 : vector<16x144xf32>
    %167 = vector.broadcast %161 : vector<1x144xf32> to vector<16x144xf32>
    %168 = arith.mulf %158, %167 : vector<16x144xf32>
    %169 = arith.addf %166, %168 : vector<16x144xf32>
    %c0_48 = arith.constant 0 : index
    %c0_49 = arith.constant 0 : index
    %170 = vector.load %arg7[%c0_48, %c0_49] : memref<24x16xf32, #tpu.memory_space<vmem>>, vector<24x16xf32>
    %cst_50 = arith.constant dense<0.000000e+00> : vector<24x144xf32>
    %171 = tpu.matmul %170, %169, %cst_50 {dimension_numbers = #tpu.dot_dimension_numbers<[1], [0], [0], [1], [0, 0, 1, 1], [], []>} : vector<24x16xf32>, vector<16x144xf32>, vector<24x144xf32> -> vector<24x144xf32>
    %c0_51 = arith.constant 0 : index
    %c0_52 = arith.constant 0 : index
    %172 = vector.load %arg8[%c0_51, %c0_52] : memref<24x1xf32, #tpu.memory_space<vmem>>, vector<24x1xf32>
    %173 = vector.broadcast %172 : vector<24x1xf32> to vector<24x144xf32>
    %174 = arith.addf %171, %173 : vector<24x144xf32>
    %cst_53 = arith.constant 0.000000e+00 : f32
    %175 = vector.broadcast %cst_53 : f32 to vector<24x144xf32>
    %176 = arith.maximumf %174, %175 : vector<24x144xf32>
    %177 = vector.extract_strided_slice %176 {offsets = [0, 0], sizes = [8, 144], strides = [1, 1]} : vector<24x144xf32> to vector<8x144xf32>
    %178 = vector.broadcast %159 : vector<1x144xf32> to vector<8x144xf32>
    %179 = arith.mulf %177, %178 : vector<8x144xf32>
    %180 = vector.extract_strided_slice %176 {offsets = [8, 0], sizes = [8, 144], strides = [1, 1]} : vector<24x144xf32> to vector<8x144xf32>
    %181 = vector.broadcast %160 : vector<1x144xf32> to vector<8x144xf32>
    %182 = arith.mulf %180, %181 : vector<8x144xf32>
    %183 = arith.addf %179, %182 : vector<8x144xf32>
    %184 = vector.extract_strided_slice %176 {offsets = [16, 0], sizes = [8, 144], strides = [1, 1]} : vector<24x144xf32> to vector<8x144xf32>
    %185 = vector.broadcast %161 : vector<1x144xf32> to vector<8x144xf32>
    %186 = arith.mulf %184, %185 : vector<8x144xf32>
    %187 = arith.addf %183, %186 : vector<8x144xf32>
    %c0_54 = arith.constant 0 : index
    %c0_55 = arith.constant 0 : index
    %188 = vector.load %arg9[%c0_54, %c0_55] : memref<9x8xf32, #tpu.memory_space<vmem>>, vector<9x8xf32>
    %cst_56 = arith.constant dense<0.000000e+00> : vector<9x144xf32>
    %189 = tpu.matmul %188, %187, %cst_56 {dimension_numbers = #tpu.dot_dimension_numbers<[1], [0], [0], [1], [0, 0, 1, 1], [], []>} : vector<9x8xf32>, vector<8x144xf32>, vector<9x144xf32> -> vector<9x144xf32>
    %c0_57 = arith.constant 0 : index
    %c0_58 = arith.constant 0 : index
    %190 = vector.load %arg10[%c0_57, %c0_58] : memref<1x1xf32, #tpu.memory_space<vmem>>, vector<1x1xf32>
    %191 = vector.broadcast %190 : vector<1x1xf32> to vector<9x144xf32>
    %192 = arith.addf %189, %191 : vector<9x144xf32>
    %193 = arith.negf %192 : vector<9x144xf32>
    %194 = math.exp %193 : vector<9x144xf32>
    %cst_59 = arith.constant 1.000000e+00 : f32
    %195 = vector.broadcast %cst_59 : f32 to vector<9x144xf32>
    %196 = arith.addf %195, %194 : vector<9x144xf32>
    %197 = arith.divf %195, %196 : vector<9x144xf32>
    %c0_60 = arith.constant 0 : index
    %c0_61 = arith.constant 0 : index
    %198 = vector.load %arg11[%c0_60, %c0_61] : memref<9x144xf32, #tpu.memory_space<vmem>>, vector<9x144xf32>
    tpu.vector_store %arg11[%c0_60, %c0_61], %197 {strides = array<i32>} : memref<9x144xf32, #tpu.memory_space<vmem>>, vector<9x144xf32>,
    return
  }
}

</mosaic_0001>

<llo_original>
// kernel: cnn_ae_forward.1
$region0: #{cnn_ae_forward.1}
  #allocation0 [shape = 'u32[]', space=smem, size = 0x4, offset = 0x4, fixed_abs, tag = 'smem constant byte address 0x4 - core index']
  #allocation1 [shape = 'u32[144,128]{1,0:T(1,128)}', space=vmem, size = 0x12000, scoped, tag = 'internal scratch']
  #allocation2 [shape = 'f32[1,1]{1,0:T(1,128)S(1)}', space=vmem, size = 0x200, scoped, tag = 'scoped memory for cnn_ae_forward.1']
  %s0 = inlined_call_operand.vmem [shape: f32[32,1296], index: 0, kind: input, shape index: {}]
  %s1 = inlined_call_operand.vmem [shape: f32[8,32], index: 1, kind: input, shape index: {}]
  %s2 = inlined_call_operand.vmem [shape: f32[8,1], index: 2, kind: input, shape index: {}]
  %s3 = inlined_call_operand.vmem [shape: f32[16,216], index: 3, kind: input, shape index: {}]
  %s4 = inlined_call_operand.vmem [shape: f32[16,1], index: 4, kind: input, shape index: {}]
  %s5 = inlined_call_operand.vmem [shape: f32[27,144], index: 5, kind: input, shape index: {}]
  %s6 = inlined_call_operand.vmem [shape: f32[3,144], index: 6, kind: input, shape index: {}]
  %s7 = inlined_call_operand.vmem [shape: f32[24,16], index: 7, kind: input, shape index: {}]
  %s8 = inlined_call_operand.vmem [shape: f32[24,1], index: 8, kind: input, shape index: {}]
  %s9 = inlined_call_operand.vmem [shape: f32[9,8], index: 9, kind: input, shape index: {}]
  %s10 = inlined_call_operand.<no memory space> [shape: f32[1,1], index: 10, kind: input, shape index: {}]
  %s11 = inlined_call_operand.vmem [shape: f32[9,144], index: 11, kind: output, shape index: {}]
  %s12 = sld [smem:[#allocation0]]
  $region54: #{cnn_ae_forward.1} parent=0
    _
  %s14 = ssub.s32 1, %s12
  %s15 = scalar_select 0, %s14, %s12
  %v16 = vstv %s10
  %17 = vst [vmem:[#allocation2] sm:$0x1] %v16
  // Predicated region
  $region2: #{cnn_ae_forward.1} parent=0 // pred_check
    _
  $region3: #{cnn_ae_forward.1} parent=0 // pred_check_branch
    %19 = sbr.rel (0) target = $region5
  $region4: #{cnn_ae_forward.1} parent=0 // pred_region
    _
  $region5: #{cnn_ae_forward.1} parent=0 // pred_fallthru
    _
  // Predicated region
  $region6: #{cnn_ae_forward.1} parent=0 // pred_check
    _
  $region7: #{cnn_ae_forward.1} parent=0 // pred_check_branch
    %21 = sbr.rel (0) target = $region9
  $region8: #{cnn_ae_forward.1} parent=0 // pred_region
    _
  $region9: #{cnn_ae_forward.1} parent=0 // pred_fallthru
    _
  // Predicated region
  $region10: #{cnn_ae_forward.1} parent=0 // pred_check
    _
  $region11: #{cnn_ae_forward.1} parent=0 // pred_check_branch
    %23 = sbr.rel (0) target = $region13
  $region12: #{cnn_ae_forward.1} parent=0 // pred_region
    _
  $region13: #{cnn_ae_forward.1} parent=0 // pred_fallthru
    _
  // Predicated region
  $region14: #{cnn_ae_forward.1} parent=0 // pred_check
    _
  $region15: #{cnn_ae_forward.1} parent=0 // pred_check_branch
    %25 = sbr.rel (0) target = $region17
  $region16: #{cnn_ae_forward.1} parent=0 // pred_region
    _
  $region17: #{cnn_ae_forward.1} parent=0 // pred_fallthru
    _
  // Predicated region
  $region18: #{cnn_ae_forward.1} parent=0 // pred_check
    _
  $region19: #{cnn_ae_forward.1} parent=0 // pred_check_branch
    %27 = sbr.rel (0) target = $region21
  $region20: #{cnn_ae_forward.1} parent=0 // pred_region
    _
  $region21: #{cnn_ae_forward.1} parent=0 // pred_fallthru
    _
  // Predicated region
  $region22: #{cnn_ae_forward.1} parent=0 // pred_check
    _
  $region23: #{cnn_ae_forward.1} parent=0 // pred_check_branch
    %29 = sbr.rel (0) target = $region25
  $region24: #{cnn_ae_forward.1} parent=0 // pred_region
    _
  $region25: #{cnn_ae_forward.1} parent=0 // pred_fallthru
    _
  // Predicated region
  $region26: #{cnn_ae_forward.1} parent=0 // pred_check
    _
  $region27: #{cnn_ae_forward.1} parent=0 // pred_check_branch
    %31 = sbr.rel (0) target = $region29
  $region28: #{cnn_ae_forward.1} parent=0 // pred_region
    _
  $region29: #{cnn_ae_forward.1} parent=0 // pred_fallthru
    _
  // Predicated region
  $region30: #{cnn_ae_forward.1} parent=0 // pred_check
    _
  $region31: #{cnn_ae_forward.1} parent=0 // pred_check_branch
    %33 = sbr.rel (0) target = $region33
  $region32: #{cnn_ae_forward.1} parent=0 // pred_region
    _
  $region33: #{cnn_ae_forward.1} parent=0 // pred_fallthru
    _
  // Predicated region
  $region34: #{cnn_ae_forward.1} parent=0 // pred_check
    _
  $region35: #{cnn_ae_forward.1} parent=0 // pred_check_branch
    %35 = sbr.rel (0) target = $region37
  $region36: #{cnn_ae_forward.1} parent=0 // pred_region
    _
  $region37: #{cnn_ae_forward.1} parent=0 // pred_fallthru
    _
  // Predicated region
  $region38: #{cnn_ae_forward.1} parent=0 // pred_check
    _
  $region39: #{cnn_ae_forward.1} parent=0 // pred_check_branch
    %37 = sbr.rel (0) target = $region41
  $region40: #{cnn_ae_forward.1} parent=0 // pred_region
    _
  $region41: #{cnn_ae_forward.1} parent=0 // pred_fallthru
    _
  // Predicated region
  $region42: #{cnn_ae_forward.1} parent=0 // pred_check
    _
  $region43: #{cnn_ae_forward.1} parent=0 // pred_check_branch
    %39 = sbr.rel (0) target = $region45
  $region44: #{cnn_ae_forward.1} parent=0 // pred_region
    _
  $region45: #{cnn_ae_forward.1} parent=0 // pred_fallthru
    _
  %v40 = vld [vmem:[%s1] sm:$0xff]
  %v41 = vld [vmem:[%s0] sm:$0xff]
  %v42 = vld [vmem:[%s0 + $0x8] sm:$0xff]
  %v43 = vld [vmem:[%s0 + $0x10] sm:$0xff]
  %v44 = vld [vmem:[%s0 + $0x18] sm:$0xff]
  %v45 = vld [vmem:[%s0 + $0x20] sm:$0xff]
  %v46 = vld [vmem:[%s0 + $0x28] sm:$0xff]
  %v47 = vld [vmem:[%s0 + $0x30] sm:$0xff]
  %v48 = vld [vmem:[%s0 + $0x38] sm:$0xff]
  %v49 = vld [vmem:[%s0 + $0x40] sm:$0xff]
  %v50 = vld [vmem:[%s0 + $0x48] sm:$0xff]
  %v51 = vld [vmem:[%s0 + $0x50] sm:$0xff]
  %v52 = vld [vmem:[%s0 + $0x58] sm:$0xff]
  %v53 = vld [vmem:[%s0 + $0x60] sm:$0xff]
  %v54 = vld [vmem:[%s0 + $0x68] sm:$0xff]
  %v55 = vld [vmem:[%s0 + $0x70] sm:$0xff]
  %v56 = vld [vmem:[%s0 + $0x78] sm:$0xff]
  %v57 = vld [vmem:[%s0 + $0x80] sm:$0xff]
  %v58 = vld [vmem:[%s0 + $0x88] sm:$0xff]
  %v59 = vld [vmem:[%s0 + $0x90] sm:$0xff]
  %v60 = vld [vmem:[%s0 + $0x98] sm:$0xff]
  %v61 = vld [vmem:[%s0 + $0xa0] sm:$0xff]
  %v62 = vld [vmem:[%s0 + $0xa8] sm:$0xff]
  %v63 = vld [vmem:[%s0 + $0xb0] sm:$0xff]
  %v64 = vld [vmem:[%s0 + $0xb8] sm:$0xff]
  %v65 = vld [vmem:[%s0 + $0xc0] sm:$0xff]
  %v66 = vld [vmem:[%s0 + $0xc8] sm:$0xff]
  %v67 = vld [vmem:[%s0 + $0xd0] sm:$0xff]
  %v68 = vld [vmem:[%s0 + $0xd8] sm:$0xff]
  %v69 = vld [vmem:[%s0 + $0xe0] sm:$0xff]
  %v70 = vld [vmem:[%s0 + $0xe8] sm:$0xff]
  %v71 = vld [vmem:[%s0 + $0xf0] sm:$0xff]
  %v72 = vld [vmem:[%s0 + $0xf8] sm:$0xff]
  %v73 = vld [vmem:[%s0 + $0x100] sm:$0xff]
  %v74 = vld [vmem:[%s0 + $0x108] sm:$0xff]
  %v75 = vld [vmem:[%s0 + $0x110] sm:$0xff]
  %v76 = vld [vmem:[%s0 + $0x118] sm:$0xff]
  %v77 = vld [vmem:[%s0 + $0x120] sm:$0xff]
  %v78 = vld [vmem:[%s0 + $0x128] sm:$0xff]
  %v79 = vld [vmem:[%s0 + $0x130] sm:$0xff]
  %v80 = vld [vmem:[%s0 + $0x138] sm:$0xff]
  %v81 = vld [vmem:[%s0 + $0x140] sm:$0xff]
  %v82 = vld [vmem:[%s0 + $0x148] sm:$0xff]
  %v83 = vld [vmem:[%s0 + $0x150] sm:$0xff]
  %v84 = vld [vmem:[%s0 + $0x158] sm:$0xff]
  %v85 = vld [vmem:[%s2] sm:$0xff]
  %87 = vset.pattern.permute.xlu0 0
  %88 = vperm.xlu0 %87, %v85
  %v89 = vpop.permute.xlu0 %88
  %vm91 = vcmask 261120
  %v93 = vsel %vm91, %v40, 0
  %95 = vmatprep.subr.mxu0 %v42
  %96 = vmatpush1.msra.mxu0 %v41
  %97 = vmatprep.subr.mxu0 %v53
  %98 = vmatpush1.msra.mxu0 %v52
  %99 = vmatprep.subr.mxu0 %v64
  %100 = vmatpush1.msra.mxu0 %v63
  %101 = vmatprep.subr.mxu0 %v75
  %102 = vmatpush1.msra.mxu0 %v74
  %103 = vmatprep.subr.mxu0 0.0
  %104 = vmatpush1.msra.mxu0 0.0
  %105 = vmatprep.subr.mxu0 0.0
  %106 = vmatpush1.msra.mxu0 0.0
  %107 = vmatprep.subr.mxu0 0.0
  %108 = vmatpush1.msra.mxu0 0.0
  %109 = vmatprep.subr.mxu0 0.0
  %110 = vmatpush1.msra.mxu0 0.0
  %111 = vmatprep.subr.mxu0 0.0
  %112 = vmatpush1.msra.mxu0 0.0
  %113 = vmatprep.subr.mxu0 0.0
  %114 = vmatpush1.msra.mxu0 0.0
  %115 = vmatprep.subr.mxu0 0.0
  %116 = vmatpush1.msra.mxu0 0.0
  %117 = vmatprep.subr.mxu0 0.0
  %118 = vmatpush1.msra.mxu0 0.0
  %119 = vmatprep.subr.mxu0 0.0
  %120 = vmatpush1.msra.mxu0 0.0
  %121 = vmatprep.subr.mxu0 0.0
  %122 = vmatpush1.msra.mxu0 0.0
  %123 = vmatprep.subr.mxu0 0.0
  %124 = vmatpush1.msra.mxu0 0.0
  %125 = vmatprep.subr.mxu0 0.0
  %126 = vmatpush1.msra.mxu0 0.0
  %127 = vmatprep.subr.mxu0 0.0
  %128 = vmatpush1.msra.mxu0 0.0
  %129 = vmatprep.subr.mxu0 0.0
  %130 = vmatpush1.msra.mxu0 0.0
  %131 = vmatprep.subr.mxu0 0.0
  %132 = vmatpush1.msra.mxu0 0.0
  %133 = vmatprep.subr.mxu0 0.0
  %134 = vmatpush1.msra.mxu0 0.0
  %135 = vmatprep.subr.mxu0 0.0
  %136 = vmatpush1.msra.mxu0 0.0
  %137 = vmatprep.subr.mxu0 0.0
  %138 = vmatpush1.msra.mxu0 0.0
  %139 = vmatprep.subr.mxu0 0.0
  %140 = vmatpush1.msra.mxu0 0.0
  %141 = vmatprep.subr.mxu0 0.0
  %142 = vmatpush1.msra.mxu0 0.0
  %143 = vmatprep.subr.mxu0 0.0
  %144 = vmatpush1.msra.mxu0 0.0
  %145 = vmatprep.subr.mxu0 0.0
  %146 = vmatpush1.msra.mxu0 0.0
  %147 = vmatprep.subr.mxu0 0.0
  %148 = vmatpush1.msra.mxu0 0.0
  %149 = vmatprep.subr.mxu0 0.0
  %150 = vmatpush1.msra.mxu0 0.0
  %151 = vmatprep.subr.mxu0 0.0
  %152 = vmatpush1.msra.mxu0 0.0
  %153 = vmatprep.subr.mxu0 0.0
  %154 = vmatpush1.msra.mxu0 0.0
  %155 = vmatprep.subr.mxu0 0.0
  %156 = vmatpush1.msra.mxu0 0.0
  %157 = vmatprep.subr.mxu0 0.0
  %158 = vmatpush1.msra.mxu0 0.0
  %159 = vmatprep.mubr.f32.mxu0 0.0
  %160 = vmatmul.mubr.f32.gmra.mrb[0].mxu0 %v93
  %v161 = vpop.f32.mrb[0].mxu0
  %v162 = vadd.f32 %v89, %v161
  %v163 = vpop.f32.mrb[0].mxu0
  %v164 = vadd.f32 %v89, %v163
  %165 = vdwg.mxu0
  %166 = vmatprep.subr.mxu0 %v44
  %167 = vmatpush1.msra.mxu0 %v43
  %168 = vmatprep.subr.mxu0 %v55
  %169 = vmatpush1.msra.mxu0 %v54
  %170 = vmatprep.subr.mxu0 %v66
  %171 = vmatpush1.msra.mxu0 %v65
  %172 = vmatprep.subr.mxu0 %v77
  %173 = vmatpush1.msra.mxu0 %v76
  %174 = vmatprep.subr.mxu0 0.0
  %175 = vmatpush1.msra.mxu0 0.0
  %176 = vmatprep.subr.mxu0 0.0
  %177 = vmatpush1.msra.mxu0 0.0
  %178 = vmatprep.subr.mxu0 0.0
  %179 = vmatpush1.msra.mxu0 0.0
  %180 = vmatprep.subr.mxu0 0.0
  %181 = vmatpush1.msra.mxu0 0.0
  %182 = vmatprep.subr.mxu0 0.0
  %183 = vmatpush1.msra.mxu0 0.0
  %184 = vmatprep.subr.mxu0 0.0
  %185 = vmatpush1.msra.mxu0 0.0
  %186 = vmatprep.subr.mxu0 0.0
  %187 = vmatpush1.msra.mxu0 0.0
  %188 = vmatprep.subr.mxu0 0.0
  %189 = vmatpush1.msra.mxu0 0.0
  %190 = vmatprep.subr.mxu0 0.0
  %191 = vmatpush1.msra.mxu0 0.0
  %192 = vmatprep.subr.mxu0 0.0
  %193 = vmatpush1.msra.mxu0 0.0
  %194 = vmatprep.subr.mxu0 0.0
  %195 = vmatpush1.msra.mxu0 0.0
  %196 = vmatprep.subr.mxu0 0.0
  %197 = vmatpush1.msra.mxu0 0.0
  %198 = vmatprep.subr.mxu0 0.0
  %199 = vmatpush1.msra.mxu0 0.0
  %200 = vmatprep.subr.mxu0 0.0
  %201 = vmatpush1.msra.mxu0 0.0
  %202 = vmatprep.subr.mxu0 0.0
  %203 = vmatpush1.msra.mxu0 0.0
  %204 = vmatprep.subr.mxu0 0.0
  %205 = vmatpush1.msra.mxu0 0.0
  %206 = vmatprep.subr.mxu0 0.0
  %207 = vmatpush1.msra.mxu0 0.0
  %208 = vmatprep.subr.mxu0 0.0
  %209 = vmatpush1.msra.mxu0 0.0
  %210 = vmatprep.subr.mxu0 0.0
  %211 = vmatpush1.msra.mxu0 0.0
  %212 = vmatprep.subr.mxu0 0.0
  %213 = vmatpush1.msra.mxu0 0.0
  %214 = vmatprep.subr.mxu0 0.0
  %215 = vmatpush1.msra.mxu0 0.0
  %216 = vmatprep.subr.mxu0 0.0
  %217 = vmatpush1.msra.mxu0 0.0
  %218 = vmatprep.subr.mxu0 0.0
  %219 = vmatpush1.msra.mxu0 0.0
  %220 = vmatprep.subr.mxu0 0.0
  %221 = vmatpush1.msra.mxu0 0.0
  %222 = vmatprep.subr.mxu0 0.0
  %223 = vmatpush1.msra.mxu0 0.0
  %224 = vmatprep.subr.mxu0 0.0
  %225 = vmatpush1.msra.mxu0 0.0
  %226 = vmatprep.subr.mxu0 0.0
  %227 = vmatpush1.msra.mxu0 0.0
  %228 = vmatprep.subr.mxu0 0.0
  %229 = vmatpush1.msra.mxu0 0.0
  %230 = vmatprep.mubr.f32.mxu0 0.0
  %231 = vmatmul.mubr.f32.gmra.mrb[0].mxu0 %v93
  %v232 = vpop.f32.mrb[0].mxu0
  %v233 = vadd.f32 %v89, %v232
  %v234 = vpop.f32.mrb[0].mxu0
  %v235 = vadd.f32 %v89, %v234
  %236 = vdwg.mxu0
  %237 = vmatprep.subr.mxu0 %v46
  %238 = vmatpush1.msra.mxu0 %v45
  %239 = vmatprep.subr.mxu0 %v57
  %240 = vmatpush1.msra.mxu0 %v56
  %241 = vmatprep.subr.mxu0 %v68
  %242 = vmatpush1.msra.mxu0 %v67
  %243 = vmatprep.subr.mxu0 %v79
  %244 = vmatpush1.msra.mxu0 %v78
  %245 = vmatprep.subr.mxu0 0.0
  %246 = vmatpush1.msra.mxu0 0.0
  %247 = vmatprep.subr.mxu0 0.0
  %248 = vmatpush1.msra.mxu0 0.0
  %249 = vmatprep.subr.mxu0 0.0
  %250 = vmatpush1.msra.mxu0 0.0
  %251 = vmatprep.subr.mxu0 0.0
  %252 = vmatpush1.msra.mxu0 0.0
  %253 = vmatprep.subr.mxu0 0.0
  %254 = vmatpush1.msra.mxu0 0.0
  %255 = vmatprep.subr.mxu0 0.0
  %256 = vmatpush1.msra.mxu0 0.0
  %257 = vmatprep.subr.mxu0 0.0
  %258 = vmatpush1.msra.mxu0 0.0
  %259 = vmatprep.subr.mxu0 0.0
  %260 = vmatpush1.msra.mxu0 0.0
  %261 = vmatprep.subr.mxu0 0.0
  %262 = vmatpush1.msra.mxu0 0.0
  %263 = vmatprep.subr.mxu0 0.0
  %264 = vmatpush1.msra.mxu0 0.0
  %265 = vmatprep.subr.mxu0 0.0
  %266 = vmatpush1.msra.mxu0 0.0
  %267 = vmatprep.subr.mxu0 0.0
  %268 = vmatpush1.msra.mxu0 0.0
  %269 = vmatprep.subr.mxu0 0.0
  %270 = vmatpush1.msra.mxu0 0.0
  %271 = vmatprep.subr.mxu0 0.0
  %272 = vmatpush1.msra.mxu0 0.0
  %273 = vmatprep.subr.mxu0 0.0
  %274 = vmatpush1.msra.mxu0 0.0
  %275 = vmatprep.subr.mxu0 0.0
  %276 = vmatpush1.msra.mxu0 0.0
  %277 = vmatprep.subr.mxu0 0.0
  %278 = vmatpush1.msra.mxu0 0.0
  %279 = vmatprep.subr.mxu0 0.0
  %280 = vmatpush1.msra.mxu0 0.0
  %281 = vmatprep.subr.mxu0 0.0
  %282 = vmatpush1.msra.mxu0 0.0
  %283 = vmatprep.subr.mxu0 0.0
  %284 = vmatpush1.msra.mxu0 0.0
  %285 = vmatprep.subr.mxu0 0.0
  %286 = vmatpush1.msra.mxu0 0.0
  %287 = vmatprep.subr.mxu0 0.0
  %288 = vmatpush1.msra.mxu0 0.0
  %289 = vmatprep.subr.mxu0 0.0
  %290 = vmatpush1.msra.mxu0 0.0
  %291 = vmatprep.subr.mxu0 0.0
  %292 = vmatpush1.msra.mxu0 0.0
  %293 = vmatprep.subr.mxu0 0.0
  %294 = vmatpush1.msra.mxu0 0.0
  %295 = vmatprep.subr.mxu0 0.0
  %296 = vmatpush1.msra.mxu0 0.0
  %297 = vmatprep.subr.mxu0 0.0
  %298 = vmatpush1.msra.mxu0 0.0
  %299 = vmatprep.subr.mxu0 0.0
  %300 = vmatpush1.msra.mxu0 0.0
  %301 = vmatprep.mubr.f32.mxu0 0.0
  %302 = vmatmul.mubr.f32.gmra.mrb[0].mxu0 %v93
  %v303 = vpop.f32.mrb[0].mxu0
  %v304 = vadd.f32 %v89, %v303
  %v305 = vpop.f32.mrb[0].mxu0
  %v306 = vadd.f32 %v89, %v305
  %307 = vdwg.mxu0
  %308 = vmatprep.subr.mxu0 %v48
  %309 = vmatpush1.msra.mxu0 %v47
  %310 = vmatprep.subr.mxu0 %v59
  %311 = vmatpush1.msra.mxu0 %v58
  %312 = vmatprep.subr.mxu0 %v70
  %313 = vmatpush1.msra.mxu0 %v69
  %314 = vmatprep.subr.mxu0 %v81
  %315 = vmatpush1.msra.mxu0 %v80
  %316 = vmatprep.subr.mxu0 0.0
  %317 = vmatpush1.msra.mxu0 0.0
  %318 = vmatprep.subr.mxu0 0.0
  %319 = vmatpush1.msra.mxu0 0.0
  %320 = vmatprep.subr.mxu0 0.0
  %321 = vmatpush1.msra.mxu0 0.0
  %322 = vmatprep.subr.mxu0 0.0
  %323 = vmatpush1.msra.mxu0 0.0
  %324 = vmatprep.subr.mxu0 0.0
  %325 = vmatpush1.msra.mxu0 0.0
  %326 = vmatprep.subr.mxu0 0.0
  %327 = vmatpush1.msra.mxu0 0.0
  %328 = vmatprep.subr.mxu0 0.0
  %329 = vmatpush1.msra.mxu0 0.0
  %330 = vmatprep.subr.mxu0 0.0
  %331 = vmatpush1.msra.mxu0 0.0
  %332 = vmatprep.subr.mxu0 0.0
  %333 = vmatpush1.msra.mxu0 0.0
  %334 = vmatprep.subr.mxu0 0.0
  %335 = vmatpush1.msra.mxu0 0.0
  %336 = vmatprep.subr.mxu0 0.0
  %337 = vmatpush1.msra.mxu0 0.0
  %338 = vmatprep.subr.mxu0 0.0
  %339 = vmatpush1.msra.mxu0 0.0
  %340 = vmatprep.subr.mxu0 0.0
  %341 = vmatpush1.msra.mxu0 0.0
  %342 = vmatprep.subr.mxu0 0.0
  %343 = vmatpush1.msra.mxu0 0.0
  %344 = vmatprep.subr.mxu0 0.0
  %345 = vmatpush1.msra.mxu0 0.0
  %346 = vmatprep.subr.mxu0 0.0
  %347 = vmatpush1.msra.mxu0 0.0
  %348 = vmatprep.subr.mxu0 0.0
  %349 = vmatpush1.msra.mxu0 0.0
  %350 = vmatprep.subr.mxu0 0.0
  %351 = vmatpush1.msra.mxu0 0.0
  %352 = vmatprep.subr.mxu0 0.0
  %353 = vmatpush1.msra.mxu0 0.0
  %354 = vmatprep.subr.mxu0 0.0
  %355 = vmatpush1.msra.mxu0 0.0
  %356 = vmatprep.subr.mxu0 0.0
  %357 = vmatpush1.msra.mxu0 0.0
  %358 = vmatprep.subr.mxu0 0.0
  %359 = vmatpush1.msra.mxu0 0.0
  %360 = vmatprep.subr.mxu0 0.0
  %361 = vmatpush1.msra.mxu0 0.0
  %362 = vmatprep.subr.mxu0 0.0
  %363 = vmatpush1.msra.mxu0 0.0
  %364 = vmatprep.subr.mxu0 0.0
  %365 = vmatpush1.msra.mxu0 0.0
  %366 = vmatprep.subr.mxu0 0.0
  %367 = vmatpush1.msra.mxu0 0.0
  %368 = vmatprep.subr.mxu0 0.0
  %369 = vmatpush1.msra.mxu0 0.0
  %370 = vmatprep.subr.mxu0 0.0
  %371 = vmatpush1.msra.mxu0 0.0
  %372 = vmatprep.mubr.f32.mxu0 0.0
  %373 = vmatmul.mubr.f32.gmra.mrb[0].mxu0 %v93
  %v374 = vpop.f32.mrb[0].mxu0
  %v375 = vadd.f32 %v89, %v374
  %v376 = vpop.f32.mrb[0].mxu0
  %v377 = vadd.f32 %v89, %v376
  %378 = vdwg.mxu0
  %379 = vmatprep.subr.mxu0 %v50
  %380 = vmatpush1.msra.mxu0 %v49
  %381 = vmatprep.subr.mxu0 %v61
  %382 = vmatpush1.msra.mxu0 %v60
  %383 = vmatprep.subr.mxu0 %v72
  %384 = vmatpush1.msra.mxu0 %v71
  %385 = vmatprep.subr.mxu0 %v83
  %386 = vmatpush1.msra.mxu0 %v82
  %387 = vmatprep.subr.mxu0 0.0
  %388 = vmatpush1.msra.mxu0 0.0
  %389 = vmatprep.subr.mxu0 0.0
  %390 = vmatpush1.msra.mxu0 0.0
  %391 = vmatprep.subr.mxu0 0.0
  %392 = vmatpush1.msra.mxu0 0.0
  %393 = vmatprep.subr.mxu0 0.0
  %394 = vmatpush1.msra.mxu0 0.0
  %395 = vmatprep.subr.mxu0 0.0
  %396 = vmatpush1.msra.mxu0 0.0
  %397 = vmatprep.subr.mxu0 0.0
  %398 = vmatpush1.msra.mxu0 0.0
  %399 = vmatprep.subr.mxu0 0.0
  %400 = vmatpush1.msra.mxu0 0.0
  %401 = vmatprep.subr.mxu0 0.0
  %402 = vmatpush1.msra.mxu0 0.0
  %403 = vmatprep.subr.mxu0 0.0
  %404 = vmatpush1.msra.mxu0 0.0
  %405 = vmatprep.subr.mxu0 0.0
  %406 = vmatpush1.msra.mxu0 0.0
  %407 = vmatprep.subr.mxu0 0.0
  %408 = vmatpush1.msra.mxu0 0.0
  %409 = vmatprep.subr.mxu0 0.0
  %410 = vmatpush1.msra.mxu0 0.0
  %411 = vmatprep.subr.mxu0 0.0
  %412 = vmatpush1.msra.mxu0 0.0
  %413 = vmatprep.subr.mxu0 0.0
  %414 = vmatpush1.msra.mxu0 0.0
  %415 = vmatprep.subr.mxu0 0.0
  %416 = vmatpush1.msra.mxu0 0.0
  %417 = vmatprep.subr.mxu0 0.0
  %418 = vmatpush1.msra.mxu0 0.0
  %419 = vmatprep.subr.mxu0 0.0
  %420 = vmatpush1.msra.mxu0 0.0
  %421 = vmatprep.subr.mxu0 0.0
  %422 = vmatpush1.msra.mxu0 0.0
  %423 = vmatprep.subr.mxu0 0.0
  %424 = vmatpush1.msra.mxu0 0.0
  %425 = vmatprep.subr.mxu0 0.0
  %426 = vmatpush1.msra.mxu0 0.0
  %427 = vmatprep.subr.mxu0 0.0
  %428 = vmatpush1.msra.mxu0 0.0
  %429 = vmatprep.subr.mxu0 0.0
  %430 = vmatpush1.msra.mxu0 0.0
  %431 = vmatprep.subr.mxu0 0.0
  %432 = vmatpush1.msra.mxu0 0.0
  %433 = vmatprep.subr.mxu0 0.0
  %434 = vmatpush1.msra.mxu0 0.0
  %435 = vmatprep.subr.mxu0 0.0
  %436 = vmatpush1.msra.mxu0 0.0
  %437 = vmatprep.subr.mxu0 0.0
  %438 = vmatpush1.msra.mxu0 0.0
  %439 = vmatprep.subr.mxu0 0.0
  %440 = vmatpush1.msra.mxu0 0.0
  %441 = vmatprep.subr.mxu0 0.0
  %442 = vmatpush1.msra.mxu0 0.0
  %443 = vmatprep.mubr.f32.mxu0 0.0
  %444 = vmatmul.mubr.f32.gmra.mrb[0].mxu0 %v93
  %v445 = vpop.f32.mrb[0].mxu0
  %v446 = vadd.f32 %v89, %v445
  %v447 = vpop.f32.mrb[0].mxu0
  %v448 = vadd.f32 %v89, %v447
  %449 = vdwg.mxu0
  %450 = vmatprep.subr.mxu0 0.0
  %451 = vmatpush1.msra.mxu0 %v51
  %452 = vmatprep.subr.mxu0 0.0
  %453 = vmatpush1.msra.mxu0 %v62
  %454 = vmatprep.subr.mxu0 0.0
  %455 = vmatpush1.msra.mxu0 %v73
  %456 = vmatprep.subr.mxu0 0.0
  %457 = vmatpush1.msra.mxu0 %v84
  %458 = vmatprep.subr.mxu0 0.0
  %459 = vmatpush1.msra.mxu0 0.0
  %460 = vmatprep.subr.mxu0 0.0
  %461 = vmatpush1.msra.mxu0 0.0
  %462 = vmatprep.subr.mxu0 0.0
  %463 = vmatpush1.msra.mxu0 0.0
  %464 = vmatprep.subr.mxu0 0.0
  %465 = vmatpush1.msra.mxu0 0.0
  %466 = vmatprep.subr.mxu0 0.0
  %467 = vmatpush1.msra.mxu0 0.0
  %468 = vmatprep.subr.mxu0 0.0
  %469 = vmatpush1.msra.mxu0 0.0
  %470 = vmatprep.subr.mxu0 0.0
  %471 = vmatpush1.msra.mxu0 0.0
  %472 = vmatprep.subr.mxu0 0.0
  %473 = vmatpush1.msra.mxu0 0.0
  %474 = vmatprep.subr.mxu0 0.0
  %475 = vmatpush1.msra.mxu0 0.0
  %476 = vmatprep.subr.mxu0 0.0
  %477 = vmatpush1.msra.mxu0 0.0
  %478 = vmatprep.subr.mxu0 0.0
  %479 = vmatpush1.msra.mxu0 0.0
  %480 = vmatprep.subr.mxu0 0.0
  %481 = vmatpush1.msra.mxu0 0.0
  %482 = vmatprep.subr.mxu0 0.0
  %483 = vmatpush1.msra.mxu0 0.0
  %484 = vmatprep.subr.mxu0 0.0
  %485 = vmatpush1.msra.mxu0 0.0
  %486 = vmatprep.subr.mxu0 0.0
  %487 = vmatpush1.msra.mxu0 0.0
  %488 = vmatprep.subr.mxu0 0.0
  %489 = vmatpush1.msra.mxu0 0.0
  %490 = vmatprep.subr.mxu0 0.0
  %491 = vmatpush1.msra.mxu0 0.0
  %492 = vmatprep.subr.mxu0 0.0
  %493 = vmatpush1.msra.mxu0 0.0
  %494 = vmatprep.subr.mxu0 0.0
  %495 = vmatpush1.msra.mxu0 0.0
  %496 = vmatprep.subr.mxu0 0.0
  %497 = vmatpush1.msra.mxu0 0.0
  %498 = vmatprep.subr.mxu0 0.0
  %499 = vmatpush1.msra.mxu0 0.0
  %500 = vmatprep.subr.mxu0 0.0
  %501 = vmatpush1.msra.mxu0 0.0
  %502 = vmatprep.subr.mxu0 0.0
  %503 = vmatpush1.msra.mxu0 0.0
  %504 = vmatprep.subr.mxu0 0.0
  %505 = vmatpush1.msra.mxu0 0.0
  %506 = vmatprep.subr.mxu0 0.0
  %507 = vmatpush1.msra.mxu0 0.0
  %508 = vmatprep.subr.mxu0 0.0
  %509 = vmatpush1.msra.mxu0 0.0
  %510 = vmatprep.subr.mxu0 0.0
  %511 = vmatpush1.msra.mxu0 0.0
  %512 = vmatprep.subr.mxu0 0.0
  %513 = vmatpush1.msra.mxu0 0.0
  %514 = vmatprep.mubr.f32.mxu0 0.0
  %515 = vmatmul.mubr.f32.gmra.mrb[0].mxu0 %v93
  %v516 = vpop.f32.mrb[0].mxu0
  %v517 = vadd.f32 %v89, %v516
  %v518 = vpop.f32.mrb[0].mxu0
  %519 = vdwg.mxu0
  %v520 = vmax.f32 %v162, 0.0
  %v521 = vmax.f32 %v164, 0.0
  %v522 = vmax.f32 %v233, 0.0
  %v523 = vmax.f32 %v235, 0.0
  %v524 = vmax.f32 %v304, 0.0
  %v525 = vmax.f32 %v306, 0.0
  %v526 = vmax.f32 %v375, 0.0
  %v527 = vmax.f32 %v377, 0.0
  %v528 = vmax.f32 %v446, 0.0
  %v529 = vmax.f32 %v448, 0.0
  %v530 = vmax.f32 %v517, 0.0
  %533 = vrot.lane.b32.xlu0 %v521, 112
  %v534 = vpop.permute.xlu0 %533
  %535 = vrot.lane.b32.xlu0 %v522, 112
  %v536 = vpop.permute.xlu0 %535
  %vm537 = vcmask 916480
  %v538 = vsel %vm537, %v534, %v536
  %v541 = vmax.f32 %v520, %v538
  %v542 = vmax.f32 %v521, %v536
  %544 = vrot.lane.b32.xlu0 %v522, 96
  %v545 = vpop.permute.xlu0 %544
  %546 = vrot.lane.b32.xlu0 %v523, 96
  %v547 = vpop.permute.xlu0 %546
  %vm548 = vcmask 785408
  %v549 = vsel %vm548, %v545, %v547
  %v552 = vmax.f32 %v541, %v549
  %v553 = vmax.f32 %v542, %v547
  %555 = vrot.lane.b32.xlu0 %v523, 80
  %v556 = vpop.permute.xlu0 %555
  %557 = vrot.lane.b32.xlu0 %v524, 80
  %v558 = vpop.permute.xlu0 %557
  %vm559 = vcmask 654336
  %v560 = vsel %vm559, %v556, %v558
  %v563 = vmax.f32 %v552, %v560
  %v564 = vmax.f32 %v553, %v558
  %566 = vrot.lane.b32.xlu0 %v524, 64
  %v567 = vpop.permute.xlu0 %566
  %568 = vrot.lane.b32.xlu0 %v525, 64
  %v569 = vpop.permute.xlu0 %568
  %vm570 = vcmask 523264
  %v571 = vsel %vm570, %v567, %v569
  %v574 = vmax.f32 %v563, %v571
  %v575 = vmax.f32 %v564, %v569
  %577 = vrot.lane.b32.xlu0 %v525, 48
  %v578 = vpop.permute.xlu0 %577
  %579 = vrot.lane.b32.xlu0 %v526, 48
  %v580 = vpop.permute.xlu0 %579
  %vm581 = vcmask 392192
  %v582 = vsel %vm581, %v578, %v580
  %v585 = vmax.f32 %v574, %v582
  %v586 = vmax.f32 %v575, %v580
  %588 = vrot.lane.b32.xlu0 %v526, 32
  %v589 = vpop.permute.xlu0 %588
  %590 = vrot.lane.b32.xlu0 %v527, 32
  %v591 = vpop.permute.xlu0 %590
  %v592 = vsel %vm91, %v589, %v591
  %v595 = vmax.f32 %v585, %v592
  %v596 = vmax.f32 %v586, %v591
  %598 = vrot.lane.b32.xlu0 %v527, 16
  %v599 = vpop.permute.xlu0 %598
  %600 = vrot.lane.b32.xlu0 %v528, 16
  %v601 = vpop.permute.xlu0 %600
  %vm602 = vcmask 130048
  %v603 = vsel %vm602, %v599, %v601
  %v606 = vmax.f32 %v595, %v603
  %v607 = vmax.f32 %v596, %v601
  %v608 = vmax.f32 %v606, %v529
  %v609 = vmax.f32 %v607, %v530
  %612 = vrot.lane.b32.xlu0 %v608, 32
  %v613 = vpop.permute.xlu0 %612
  %614 = vrot.lane.b32.xlu0 %v609, 32
  %v615 = vpop.permute.xlu0 %614
  %v616 = vsel %vm91, %v613, %v615
  %v619 = vsel %vm91, 0.0, %v613
  %v620 = vsel %vm581, %v616, 0.0
  %v621 = vld [vmem:[%s5] ss:$8 sm:$0x3]
  %v623 = vlaneseq
  %v624 = vshrl.u32 %v623, 7
  %v625 = vsub.s32 0, %v624
  %v626 = vrot.slane %v621, %v625
  %v627 = vlaneseq
  %v628 = vshrl.u32 %v627, 7
  %v629 = vsub.s32 1, %v628
  %v630 = vrot.slane %v621, %v629
  %631 = vrot.lane.b32.xlu0 %v626, 7
  %v632 = vpop.permute.xlu0 %631
  %633 = vrot.lane.b32.xlu0 %v630, 7
  %v634 = vpop.permute.xlu0 %633
  %vm635 = vcmask 56320
  %v636 = vsel %vm635, %v632, %v634
  %v639 = vmul.f32 %v619, %v632
  %v640 = vmul.f32 %v620, %v636
  %s641 = scalar_lea.vmem %s5, 1
  %v642 = vld [vmem:[%s641] ss:$8 sm:$0x3]
  %v644 = vlaneseq
  %v645 = vshrl.u32 %v644, 7
  %v646 = vsub.s32 0, %v645
  %v647 = vrot.slane %v642, %v646
  %v648 = vlaneseq
  %v649 = vshrl.u32 %v648, 7
  %v650 = vsub.s32 1, %v649
  %v651 = vrot.slane %v642, %v650
  %652 = vrot.lane.b32.xlu0 %v647, 8
  %v653 = vpop.permute.xlu0 %652
  %654 = vrot.lane.b32.xlu0 %v651, 8
  %v655 = vpop.permute.xlu0 %654
  %vm656 = vcmask 64512
  %v657 = vsel %vm656, %v653, %v655
  %v660 = vmul.f32 %v619, %v653
  %v661 = vmul.f32 %v620, %v657
  %s662 = scalar_lea.vmem %s5, 2
  %v663 = vld [vmem:[%s662] ss:$8 sm:$0x3]
  %v665 = vlaneseq
  %v666 = vshrl.u32 %v665, 7
  %v667 = vsub.s32 0, %v666
  %v668 = vrot.slane %v663, %v667
  %v669 = vlaneseq
  %v670 = vshrl.u32 %v669, 7
  %v671 = vsub.s32 1, %v670
  %v672 = vrot.slane %v663, %v671
  %673 = vrot.lane.b32.xlu0 %v668, 9
  %v674 = vpop.permute.xlu0 %673
  %675 = vrot.lane.b32.xlu0 %v672, 9
  %v676 = vpop.permute.xlu0 %675
  %vm677 = vcmask 72704
  %v678 = vsel %vm677, %v674, %v676
  %v681 = vmul.f32 %v619, %v674
  %v682 = vmul.f32 %v620, %v678
  %s683 = scalar_lea.vmem %s5, 3
  %v684 = vld [vmem:[%s683] ss:$8 sm:$0x3]
  %v686 = vlaneseq
  %v687 = vshrl.u32 %v686, 7
  %v688 = vsub.s32 0, %v687
  %v689 = vrot.slane %v684, %v688
  %v690 = vlaneseq
  %v691 = vshrl.u32 %v690, 7
  %v692 = vsub.s32 1, %v691
  %v693 = vrot.slane %v684, %v692
  %694 = vrot.lane.b32.xlu0 %v689, 13
  %v695 = vpop.permute.xlu0 %694
  %696 = vrot.lane.b32.xlu0 %v693, 13
  %v697 = vpop.permute.xlu0 %696
  %vm698 = vcmask 105472
  %v699 = vsel %vm698, %v695, %v697
  %v702 = vmul.f32 %v619, %v695
  %v703 = vmul.f32 %v620, %v699
  %s704 = scalar_lea.vmem %s5, 4
  %v705 = vld [vmem:[%s704] ss:$8 sm:$0x3]
  %v707 = vlaneseq
  %v708 = vshrl.u32 %v707, 7
  %v709 = vsub.s32 0, %v708
  %v710 = vrot.slane %v705, %v709
  %v711 = vlaneseq
  %v712 = vshrl.u32 %v711, 7
  %v713 = vsub.s32 1, %v712
  %v714 = vrot.slane %v705, %v713
  %715 = vrot.lane.b32.xlu0 %v710, 14
  %v716 = vpop.permute.xlu0 %715
  %717 = vrot.lane.b32.xlu0 %v714, 14
  %v718 = vpop.permute.xlu0 %717
  %vm719 = vcmask 113664
  %v720 = vsel %vm719, %v716, %v718
  %v723 = vmul.f32 %v619, %v716
  %v724 = vmul.f32 %v620, %v720
  %s725 = scalar_lea.vmem %s5, 5
  %v726 = vld [vmem:[%s725] ss:$8 sm:$0x3]
  %v728 = vlaneseq
  %v729 = vshrl.u32 %v728, 7
  %v730 = vsub.s32 0, %v729
  %v731 = vrot.slane %v726, %v730
  %v732 = vlaneseq
  %v733 = vshrl.u32 %v732, 7
  %v734 = vsub.s32 1, %v733
  %v735 = vrot.slane %v726, %v734
  %736 = vrot.lane.b32.xlu0 %v731, 15
  %v737 = vpop.permute.xlu0 %736
  %738 = vrot.lane.b32.xlu0 %v735, 15
  %v739 = vpop.permute.xlu0 %738
  %vm740 = vcmask 121856
  %v741 = vsel %vm740, %v737, %v739
  %v744 = vmul.f32 %v619, %v737
  %v745 = vmul.f32 %v620, %v741
  %s746 = scalar_lea.vmem %s5, 6
  %v747 = vld [vmem:[%s746] ss:$8 sm:$0x3]
  %v749 = vlaneseq
  %v750 = vshrl.u32 %v749, 7
  %v751 = vsub.s32 0, %v750
  %v752 = vrot.slane %v747, %v751
  %v753 = vlaneseq
  %v754 = vshrl.u32 %v753, 7
  %v755 = vsub.s32 1, %v754
  %v756 = vrot.slane %v747, %v755
  %757 = vrot.lane.b32.xlu0 %v752, 19
  %v758 = vpop.permute.xlu0 %757
  %759 = vrot.lane.b32.xlu0 %v756, 19
  %v760 = vpop.permute.xlu0 %759
  %vm761 = vcmask 154624
  %v762 = vsel %vm761, %v758, %v760
  %v765 = vmul.f32 %v619, %v758
  %v766 = vmul.f32 %v620, %v762
  %s767 = scalar_lea.vmem %s5, 7
  %v768 = vld [vmem:[%s767] ss:$8 sm:$0x3]
  %v770 = vlaneseq
  %v771 = vshrl.u32 %v770, 7
  %v772 = vsub.s32 0, %v771
  %v773 = vrot.slane %v768, %v772
  %v774 = vlaneseq
  %v775 = vshrl.u32 %v774, 7
  %v776 = vsub.s32 1, %v775
  %v777 = vrot.slane %v768, %v776
  %778 = vrot.lane.b32.xlu0 %v773, 20
  %v779 = vpop.permute.xlu0 %778
  %780 = vrot.lane.b32.xlu0 %v777, 20
  %v781 = vpop.permute.xlu0 %780
  %vm782 = vcmask 162816
  %v783 = vsel %vm782, %v779, %v781
  %v786 = vmul.f32 %v619, %v779
  %v787 = vmul.f32 %v620, %v783
  %s788 = scalar_lea.vmem %s5, 16
  %v789 = vld [vmem:[%s788] ss:$8 sm:$0x3]
  %v791 = vlaneseq
  %v792 = vshrl.u32 %v791, 7
  %v793 = vsub.s32 0, %v792
  %v794 = vrot.slane %v789, %v793
  %v795 = vlaneseq
  %v796 = vshrl.u32 %v795, 7
  %v797 = vsub.s32 1, %v796
  %v798 = vrot.slane %v789, %v797
  %799 = vrot.lane.b32.xlu0 %v794, 21
  %v800 = vpop.permute.xlu0 %799
  %801 = vrot.lane.b32.xlu0 %v798, 21
  %v802 = vpop.permute.xlu0 %801
  %vm803 = vcmask 171008
  %v804 = vsel %vm803, %v800, %v802
  %v807 = vmul.f32 %v619, %v800
  %v808 = vmul.f32 %v620, %v804
  %s809 = scalar_lea.vmem %s5, 17
  %v810 = vld [vmem:[%s809] ss:$8 sm:$0x3]
  %v812 = vlaneseq
  %v813 = vshrl.u32 %v812, 7
  %v814 = vsub.s32 0, %v813
  %v815 = vrot.slane %v810, %v814
  %v816 = vlaneseq
  %v817 = vshrl.u32 %v816, 7
  %v818 = vsub.s32 1, %v817
  %v819 = vrot.slane %v810, %v818
  %820 = vrot.lane.b32.xlu0 %v815, 25
  %v821 = vpop.permute.xlu0 %820
  %822 = vrot.lane.b32.xlu0 %v819, 25
  %v823 = vpop.permute.xlu0 %822
  %vm824 = vcmask 203776
  %v825 = vsel %vm824, %v821, %v823
  %v828 = vmul.f32 %v619, %v821
  %v829 = vmul.f32 %v620, %v825
  %s830 = scalar_lea.vmem %s5, 18
  %v831 = vld [vmem:[%s830] ss:$8 sm:$0x3]
  %v833 = vlaneseq
  %v834 = vshrl.u32 %v833, 7
  %v835 = vsub.s32 0, %v834
  %v836 = vrot.slane %v831, %v835
  %v837 = vlaneseq
  %v838 = vshrl.u32 %v837, 7
  %v839 = vsub.s32 1, %v838
  %v840 = vrot.slane %v831, %v839
  %841 = vrot.lane.b32.xlu0 %v836, 26
  %v842 = vpop.permute.xlu0 %841
  %843 = vrot.lane.b32.xlu0 %v840, 26
  %v844 = vpop.permute.xlu0 %843
  %vm845 = vcmask 211968
  %v846 = vsel %vm845, %v842, %v844
  %v849 = vmul.f32 %v619, %v842
  %v850 = vmul.f32 %v620, %v846
  %s851 = scalar_lea.vmem %s5, 19
  %v852 = vld [vmem:[%s851] ss:$8 sm:$0x3]
  %v854 = vlaneseq
  %v855 = vshrl.u32 %v854, 7
  %v856 = vsub.s32 0, %v855
  %v857 = vrot.slane %v852, %v856
  %v858 = vlaneseq
  %v859 = vshrl.u32 %v858, 7
  %v860 = vsub.s32 1, %v859
  %v861 = vrot.slane %v852, %v860
  %862 = vrot.lane.b32.xlu0 %v857, 27
  %v863 = vpop.permute.xlu0 %862
  %864 = vrot.lane.b32.xlu0 %v861, 27
  %v865 = vpop.permute.xlu0 %864
  %vm866 = vcmask 220160
  %v867 = vsel %vm866, %v863, %v865
  %v870 = vmul.f32 %v619, %v863
  %v871 = vmul.f32 %v620, %v867
  %s872 = scalar_lea.vmem %s5, 20
  %v873 = vld [vmem:[%s872] ss:$8 sm:$0x3]
  %v875 = vlaneseq
  %v876 = vshrl.u32 %v875, 7
  %v877 = vsub.s32 0, %v876
  %v878 = vrot.slane %v873, %v877
  %v879 = vlaneseq
  %v880 = vshrl.u32 %v879, 7
  %v881 = vsub.s32 1, %v880
  %v882 = vrot.slane %v873, %v881
  %883 = vrot.lane.b32.xlu0 %v878, 31
  %v884 = vpop.permute.xlu0 %883
  %885 = vrot.lane.b32.xlu0 %v882, 31
  %v886 = vpop.permute.xlu0 %885
  %vm887 = vcmask 252928
  %v888 = vsel %vm887, %v884, %v886
  %v891 = vmul.f32 %v619, %v884
  %v892 = vmul.f32 %v620, %v888
  %s893 = scalar_lea.vmem %s5, 21
  %v894 = vld [vmem:[%s893] ss:$8 sm:$0x3]
  %v896 = vlaneseq
  %v897 = vshrl.u32 %v896, 7
  %v898 = vsub.s32 0, %v897
  %v899 = vrot.slane %v894, %v898
  %v900 = vlaneseq
  %v901 = vshrl.u32 %v900, 7
  %v902 = vsub.s32 1, %v901
  %v903 = vrot.slane %v894, %v902
  %904 = vrot.lane.b32.xlu0 %v899, 32
  %v905 = vpop.permute.xlu0 %904
  %906 = vrot.lane.b32.xlu0 %v903, 32
  %v907 = vpop.permute.xlu0 %906
  %v908 = vsel %vm91, %v905, %v907
  %v911 = vmul.f32 %v619, %v905
  %v912 = vmul.f32 %v620, %v908
  %s913 = scalar_lea.vmem %s5, 22
  %v914 = vld [vmem:[%s913] ss:$8 sm:$0x3]
  %v916 = vlaneseq
  %v917 = vshrl.u32 %v916, 7
  %v918 = vsub.s32 0, %v917
  %v919 = vrot.slane %v914, %v918
  %v920 = vlaneseq
  %v921 = vshrl.u32 %v920, 7
  %v922 = vsub.s32 1, %v921
  %v923 = vrot.slane %v914, %v922
  %924 = vrot.lane.b32.xlu0 %v919, 33
  %v925 = vpop.permute.xlu0 %924
  %926 = vrot.lane.b32.xlu0 %v923, 33
  %v927 = vpop.permute.xlu0 %926
  %vm928 = vcmask 269312
  %v929 = vsel %vm928, %v925, %v927
  %v932 = vmul.f32 %v619, %v925
  %v933 = vmul.f32 %v620, %v929
  %s934 = scalar_lea.vmem %s5, 23
  %v935 = vld [vmem:[%s934] ss:$8 sm:$0x3]
  %v937 = vlaneseq
  %v938 = vshrl.u32 %v937, 7
  %v939 = vsub.s32 0, %v938
  %v940 = vrot.slane %v935, %v939
  %v941 = vlaneseq
  %v942 = vshrl.u32 %v941, 7
  %v943 = vsub.s32 1, %v942
  %v944 = vrot.slane %v935, %v943
  %945 = vrot.lane.b32.xlu0 %v940, 37
  %v946 = vpop.permute.xlu0 %945
  %947 = vrot.lane.b32.xlu0 %v944, 37
  %v948 = vpop.permute.xlu0 %947
  %vm949 = vcmask 302080
  %v950 = vsel %vm949, %v946, %v948
  %v953 = vmul.f32 %v619, %v946
  %v954 = vmul.f32 %v620, %v950
  %s955 = scalar_lea.vmem %s5, 32
  %v956 = vld [vmem:[%s955] ss:$8 sm:$0x3]
  %v958 = vlaneseq
  %v959 = vshrl.u32 %v958, 7
  %v960 = vsub.s32 0, %v959
  %v961 = vrot.slane %v956, %v960
  %v962 = vlaneseq
  %v963 = vshrl.u32 %v962, 7
  %v964 = vsub.s32 1, %v963
  %v965 = vrot.slane %v956, %v964
  %966 = vrot.lane.b32.xlu0 %v961, 38
  %v967 = vpop.permute.xlu0 %966
  %968 = vrot.lane.b32.xlu0 %v965, 38
  %v969 = vpop.permute.xlu0 %968
  %vm970 = vcmask 310272
  %v971 = vsel %vm970, %v967, %v969
  %v974 = vmul.f32 %v619, %v967
  %v975 = vmul.f32 %v620, %v971
  %s976 = scalar_lea.vmem %s5, 33
  %v977 = vld [vmem:[%s976] ss:$8 sm:$0x3]
  %v979 = vlaneseq
  %v980 = vshrl.u32 %v979, 7
  %v981 = vsub.s32 0, %v980
  %v982 = vrot.slane %v977, %v981
  %v983 = vlaneseq
  %v984 = vshrl.u32 %v983, 7
  %v985 = vsub.s32 1, %v984
  %v986 = vrot.slane %v977, %v985
  %987 = vrot.lane.b32.xlu0 %v982, 39
  %v988 = vpop.permute.xlu0 %987
  %989 = vrot.lane.b32.xlu0 %v986, 39
  %v990 = vpop.permute.xlu0 %989
  %vm991 = vcmask 318464
  %v992 = vsel %vm991, %v988, %v990
  %v995 = vmul.f32 %v619, %v988
  %v996 = vmul.f32 %v620, %v992
  %s997 = scalar_lea.vmem %s5, 34
  %v998 = vld [vmem:[%s997] ss:$8 sm:$0x3]
  %v1000 = vlaneseq
  %v1001 = vshrl.u32 %v1000, 7
  %v1002 = vsub.s32 0, %v1001
  %v1003 = vrot.slane %v998, %v1002
  %v1004 = vlaneseq
  %v1005 = vshrl.u32 %v1004, 7
  %v1006 = vsub.s32 1, %v1005
  %v1007 = vrot.slane %v998, %v1006
  %1008 = vrot.lane.b32.xlu0 %v1003, 43
  %v1009 = vpop.permute.xlu0 %1008
  %1010 = vrot.lane.b32.xlu0 %v1007, 43
  %v1011 = vpop.permute.xlu0 %1010
  %vm1012 = vcmask 351232
  %v1013 = vsel %vm1012, %v1009, %v1011
  %v1016 = vmul.f32 %v619, %v1009
  %v1017 = vmul.f32 %v620, %v1013
  %s1018 = scalar_lea.vmem %s5, 35
  %v1019 = vld [vmem:[%s1018] ss:$8 sm:$0x3]
  %v1021 = vlaneseq
  %v1022 = vshrl.u32 %v1021, 7
  %v1023 = vsub.s32 0, %v1022
  %v1024 = vrot.slane %v1019, %v1023
  %v1025 = vlaneseq
  %v1026 = vshrl.u32 %v1025, 7
  %v1027 = vsub.s32 1, %v1026
  %v1028 = vrot.slane %v1019, %v1027
  %1029 = vrot.lane.b32.xlu0 %v1024, 44
  %v1030 = vpop.permute.xlu0 %1029
  %1031 = vrot.lane.b32.xlu0 %v1028, 44
  %v1032 = vpop.permute.xlu0 %1031
  %vm1033 = vcmask 359424
  %v1034 = vsel %vm1033, %v1030, %v1032
  %v1037 = vmul.f32 %v619, %v1030
  %v1038 = vmul.f32 %v620, %v1034
  %s1039 = scalar_lea.vmem %s5, 36
  %v1040 = vld [vmem:[%s1039] ss:$8 sm:$0x3]
  %v1042 = vlaneseq
  %v1043 = vshrl.u32 %v1042, 7
  %v1044 = vsub.s32 0, %v1043
  %v1045 = vrot.slane %v1040, %v1044
  %v1046 = vlaneseq
  %v1047 = vshrl.u32 %v1046, 7
  %v1048 = vsub.s32 1, %v1047
  %v1049 = vrot.slane %v1040, %v1048
  %1050 = vrot.lane.b32.xlu0 %v1045, 45
  %v1051 = vpop.permute.xlu0 %1050
  %1052 = vrot.lane.b32.xlu0 %v1049, 45
  %v1053 = vpop.permute.xlu0 %1052
  %vm1054 = vcmask 367616
  %v1055 = vsel %vm1054, %v1051, %v1053
  %v1058 = vmul.f32 %v619, %v1051
  %v1059 = vmul.f32 %v620, %v1055
  %s1060 = scalar_lea.vmem %s5, 37
  %v1061 = vld [vmem:[%s1060] ss:$8 sm:$0x3]
  %v1063 = vlaneseq
  %v1064 = vshrl.u32 %v1063, 7
  %v1065 = vsub.s32 0, %v1064
  %v1066 = vrot.slane %v1061, %v1065
  %v1067 = vlaneseq
  %v1068 = vshrl.u32 %v1067, 7
  %v1069 = vsub.s32 1, %v1068
  %v1070 = vrot.slane %v1061, %v1069
  %1071 = vrot.lane.b32.xlu0 %v1066, 49
  %v1072 = vpop.permute.xlu0 %1071
  %1073 = vrot.lane.b32.xlu0 %v1070, 49
  %v1074 = vpop.permute.xlu0 %1073
  %vm1075 = vcmask 400384
  %v1076 = vsel %vm1075, %v1072, %v1074
  %v1079 = vmul.f32 %v619, %v1072
  %v1080 = vmul.f32 %v620, %v1076
  %s1081 = scalar_lea.vmem %s5, 38
  %v1082 = vld [vmem:[%s1081] ss:$8 sm:$0x3]
  %v1084 = vlaneseq
  %v1085 = vshrl.u32 %v1084, 7
  %v1086 = vsub.s32 0, %v1085
  %v1087 = vrot.slane %v1082, %v1086
  %v1088 = vlaneseq
  %v1089 = vshrl.u32 %v1088, 7
  %v1090 = vsub.s32 1, %v1089
  %v1091 = vrot.slane %v1082, %v1090
  %1092 = vrot.lane.b32.xlu0 %v1087, 50
  %v1093 = vpop.permute.xlu0 %1092
  %1094 = vrot.lane.b32.xlu0 %v1091, 50
  %v1095 = vpop.permute.xlu0 %1094
  %vm1096 = vcmask 408576
  %v1097 = vsel %vm1096, %v1093, %v1095
  %v1100 = vmul.f32 %v619, %v1093
  %v1101 = vmul.f32 %v620, %v1097
  %s1102 = scalar_lea.vmem %s5, 39
  %v1103 = vld [vmem:[%s1102] ss:$8 sm:$0x3]
  %v1105 = vlaneseq
  %v1106 = vshrl.u32 %v1105, 7
  %v1107 = vsub.s32 0, %v1106
  %v1108 = vrot.slane %v1103, %v1107
  %v1109 = vlaneseq
  %v1110 = vshrl.u32 %v1109, 7
  %v1111 = vsub.s32 1, %v1110
  %v1112 = vrot.slane %v1103, %v1111
  %1113 = vrot.lane.b32.xlu0 %v1108, 51
  %v1114 = vpop.permute.xlu0 %1113
  %1115 = vrot.lane.b32.xlu0 %v1112, 51
  %v1116 = vpop.permute.xlu0 %1115
  %vm1117 = vcmask 416768
  %v1118 = vsel %vm1117, %v1114, %v1116
  %v1121 = vmul.f32 %v619, %v1114
  %v1122 = vmul.f32 %v620, %v1118
  %s1123 = scalar_lea.vmem %s5, 48
  %v1124 = vld [vmem:[%s1123] ss:$8 sm:$0x3]
  %v1126 = vlaneseq
  %v1127 = vshrl.u32 %v1126, 7
  %v1128 = vsub.s32 0, %v1127
  %v1129 = vrot.slane %v1124, %v1128
  %v1130 = vlaneseq
  %v1131 = vshrl.u32 %v1130, 7
  %v1132 = vsub.s32 1, %v1131
  %v1133 = vrot.slane %v1124, %v1132
  %1134 = vrot.lane.b32.xlu0 %v1129, 55
  %v1135 = vpop.permute.xlu0 %1134
  %1136 = vrot.lane.b32.xlu0 %v1133, 55
  %v1137 = vpop.permute.xlu0 %1136
  %vm1138 = vcmask 449536
  %v1139 = vsel %vm1138, %v1135, %v1137
  %v1142 = vmul.f32 %v619, %v1135
  %v1143 = vmul.f32 %v620, %v1139
  %s1144 = scalar_lea.vmem %s5, 49
  %v1145 = vld [vmem:[%s1144] ss:$8 sm:$0x3]
  %v1147 = vlaneseq
  %v1148 = vshrl.u32 %v1147, 7
  %v1149 = vsub.s32 0, %v1148
  %v1150 = vrot.slane %v1145, %v1149
  %v1151 = vlaneseq
  %v1152 = vshrl.u32 %v1151, 7
  %v1153 = vsub.s32 1, %v1152
  %v1154 = vrot.slane %v1145, %v1153
  %1155 = vrot.lane.b32.xlu0 %v1150, 56
  %v1156 = vpop.permute.xlu0 %1155
  %1157 = vrot.lane.b32.xlu0 %v1154, 56
  %v1158 = vpop.permute.xlu0 %1157
  %vm1159 = vcmask 457728
  %v1160 = vsel %vm1159, %v1156, %v1158
  %v1163 = vmul.f32 %v619, %v1156
  %v1164 = vmul.f32 %v620, %v1160
  %s1165 = scalar_lea.vmem %s5, 50
  %v1166 = vld [vmem:[%s1165] ss:$8 sm:$0x3]
  %v1168 = vlaneseq
  %v1169 = vshrl.u32 %v1168, 7
  %v1170 = vsub.s32 0, %v1169
  %v1171 = vrot.slane %v1166, %v1170
  %v1172 = vlaneseq
  %v1173 = vshrl.u32 %v1172, 7
  %v1174 = vsub.s32 1, %v1173
  %v1175 = vrot.slane %v1166, %v1174
  %1176 = vrot.lane.b32.xlu0 %v1171, 57
  %v1177 = vpop.permute.xlu0 %1176
  %1178 = vrot.lane.b32.xlu0 %v1175, 57
  %v1179 = vpop.permute.xlu0 %1178
  %vm1180 = vcmask 465920
  %v1181 = vsel %vm1180, %v1177, %v1179
  %v1184 = vmul.f32 %v619, %v1177
  %v1185 = vmul.f32 %v620, %v1181
  %1188 = vrot.lane.b32.xlu0 %v660, 127
  %v1189 = vpop.permute.xlu0 %1188
  %1190 = vrot.lane.b32.xlu0 %v661, 127
  %v1191 = vpop.permute.xlu0 %1190
  %vm1192 = vcmask 1039360
  %v1193 = vsel %vm1192, %v1189, %v1191
  %1196 = vrot.lane.b32.xlu0 %v681, 126
  %v1197 = vpop.permute.xlu0 %1196
  %1198 = vrot.lane.b32.xlu0 %v682, 126
  %v1199 = vpop.permute.xlu0 %1198
  %vm1200 = vcmask 1031168
  %v1201 = vsel %vm1200, %v1197, %v1199
  %1204 = vrot.lane.b32.xlu0 %v702, 122
  %v1205 = vpop.permute.xlu0 %1204
  %1206 = vrot.lane.b32.xlu0 %v703, 122
  %v1207 = vpop.permute.xlu0 %1206
  %vm1208 = vcmask 998400
  %v1209 = vsel %vm1208, %v1205, %v1207
  %1212 = vrot.lane.b32.xlu0 %v723, 121
  %v1213 = vpop.permute.xlu0 %1212
  %1214 = vrot.lane.b32.xlu0 %v724, 121
  %v1215 = vpop.permute.xlu0 %1214
  %vm1216 = vcmask 990208
  %v1217 = vsel %vm1216, %v1213, %v1215
  %1220 = vrot.lane.b32.xlu0 %v744, 120
  %v1221 = vpop.permute.xlu0 %1220
  %1222 = vrot.lane.b32.xlu0 %v745, 120
  %v1223 = vpop.permute.xlu0 %1222
  %vm1224 = vcmask 982016
  %v1225 = vsel %vm1224, %v1221, %v1223
  %1228 = vrot.lane.b32.xlu0 %v765, 116
  %v1229 = vpop.permute.xlu0 %1228
  %1230 = vrot.lane.b32.xlu0 %v766, 116
  %v1231 = vpop.permute.xlu0 %1230
  %vm1232 = vcmask 949248
  %v1233 = vsel %vm1232, %v1229, %v1231
  %1236 = vrot.lane.b32.xlu0 %v786, 115
  %v1237 = vpop.permute.xlu0 %1236
  %1238 = vrot.lane.b32.xlu0 %v787, 115
  %v1239 = vpop.permute.xlu0 %1238
  %vm1240 = vcmask 941056
  %v1241 = vsel %vm1240, %v1237, %v1239
  %1244 = vrot.lane.b32.xlu0 %v807, 114
  %v1245 = vpop.permute.xlu0 %1244
  %1246 = vrot.lane.b32.xlu0 %v808, 114
  %v1247 = vpop.permute.xlu0 %1246
  %vm1248 = vcmask 932864
  %v1249 = vsel %vm1248, %v1245, %v1247
  %1252 = vrot.lane.b32.xlu0 %v828, 110
  %v1253 = vpop.permute.xlu0 %1252
  %1254 = vrot.lane.b32.xlu0 %v829, 110
  %v1255 = vpop.permute.xlu0 %1254
  %vm1256 = vcmask 900096
  %v1257 = vsel %vm1256, %v1253, %v1255
  %1260 = vrot.lane.b32.xlu0 %v849, 109
  %v1261 = vpop.permute.xlu0 %1260
  %1262 = vrot.lane.b32.xlu0 %v850, 109
  %v1263 = vpop.permute.xlu0 %1262
  %vm1264 = vcmask 891904
  %v1265 = vsel %vm1264, %v1261, %v1263
  %1268 = vrot.lane.b32.xlu0 %v870, 108
  %v1269 = vpop.permute.xlu0 %1268
  %1270 = vrot.lane.b32.xlu0 %v871, 108
  %v1271 = vpop.permute.xlu0 %1270
  %vm1272 = vcmask 883712
  %v1273 = vsel %vm1272, %v1269, %v1271
  %1276 = vrot.lane.b32.xlu0 %v891, 104
  %v1277 = vpop.permute.xlu0 %1276
  %1278 = vrot.lane.b32.xlu0 %v892, 104
  %v1279 = vpop.permute.xlu0 %1278
  %vm1280 = vcmask 850944
  %v1281 = vsel %vm1280, %v1277, %v1279
  %1284 = vrot.lane.b32.xlu0 %v911, 103
  %v1285 = vpop.permute.xlu0 %1284
  %1286 = vrot.lane.b32.xlu0 %v912, 103
  %v1287 = vpop.permute.xlu0 %1286
  %vm1288 = vcmask 842752
  %v1289 = vsel %vm1288, %v1285, %v1287
  %1292 = vrot.lane.b32.xlu0 %v932, 102
  %v1293 = vpop.permute.xlu0 %1292
  %1294 = vrot.lane.b32.xlu0 %v933, 102
  %v1295 = vpop.permute.xlu0 %1294
  %vm1296 = vcmask 834560
  %v1297 = vsel %vm1296, %v1293, %v1295
  %1300 = vrot.lane.b32.xlu0 %v953, 98
  %v1301 = vpop.permute.xlu0 %1300
  %1302 = vrot.lane.b32.xlu0 %v954, 98
  %v1303 = vpop.permute.xlu0 %1302
  %vm1304 = vcmask 801792
  %v1305 = vsel %vm1304, %v1301, %v1303
  %1308 = vrot.lane.b32.xlu0 %v995, 127
  %v1309 = vpop.permute.xlu0 %1308
  %1310 = vrot.lane.b32.xlu0 %v996, 127
  %v1311 = vpop.permute.xlu0 %1310
  %v1312 = vsel %vm1192, %v1309, %v1311
  %1315 = vrot.lane.b32.xlu0 %v1016, 123
  %v1316 = vpop.permute.xlu0 %1315
  %1317 = vrot.lane.b32.xlu0 %v1017, 123
  %v1318 = vpop.permute.xlu0 %1317
  %vm1319 = vcmask 1006592
  %v1320 = vsel %vm1319, %v1316, %v1318
  %1323 = vrot.lane.b32.xlu0 %v1037, 122
  %v1324 = vpop.permute.xlu0 %1323
  %1325 = vrot.lane.b32.xlu0 %v1038, 122
  %v1326 = vpop.permute.xlu0 %1325
  %v1327 = vsel %vm1208, %v1324, %v1326
  %1330 = vrot.lane.b32.xlu0 %v1058, 121
  %v1331 = vpop.permute.xlu0 %1330
  %1332 = vrot.lane.b32.xlu0 %v1059, 121
  %v1333 = vpop.permute.xlu0 %1332
  %v1334 = vsel %vm1216, %v1331, %v1333
  %1337 = vrot.lane.b32.xlu0 %v1079, 117
  %v1338 = vpop.permute.xlu0 %1337
  %1339 = vrot.lane.b32.xlu0 %v1080, 117
  %v1340 = vpop.permute.xlu0 %1339
  %vm1341 = vcmask 957440
  %v1342 = vsel %vm1341, %v1338, %v1340
  %1345 = vrot.lane.b32.xlu0 %v1100, 116
  %v1346 = vpop.permute.xlu0 %1345
  %1347 = vrot.lane.b32.xlu0 %v1101, 116
  %v1348 = vpop.permute.xlu0 %1347
  %v1349 = vsel %vm1232, %v1346, %v1348
  %1352 = vrot.lane.b32.xlu0 %v1121, 115
  %v1353 = vpop.permute.xlu0 %1352
  %1354 = vrot.lane.b32.xlu0 %v1122, 115
  %v1355 = vpop.permute.xlu0 %1354
  %v1356 = vsel %vm1240, %v1353, %v1355
  %1359 = vrot.lane.b32.xlu0 %v1142, 111
  %v1360 = vpop.permute.xlu0 %1359
  %1361 = vrot.lane.b32.xlu0 %v1143, 111
  %v1362 = vpop.permute.xlu0 %1361
  %vm1363 = vcmask 908288
  %v1364 = vsel %vm1363, %v1360, %v1362
  %1367 = vrot.lane.b32.xlu0 %v1163, 110
  %v1368 = vpop.permute.xlu0 %1367
  %1369 = vrot.lane.b32.xlu0 %v1164, 110
  %v1370 = vpop.permute.xlu0 %1369
  %v1371 = vsel %vm1256, %v1368, %v1370
  %1374 = vrot.lane.b32.xlu0 %v1184, 109
  %v1375 = vpop.permute.xlu0 %1374
  %1376 = vrot.lane.b32.xlu0 %v1185, 109
  %v1377 = vpop.permute.xlu0 %1376
  %v1378 = vsel %vm1264, %v1375, %v1377
  %1381 = vrot.lane.b32.xlu0 %v974, 97
  %v1382 = vpop.permute.xlu0 %1381
  %1383 = vrot.lane.b32.xlu0 %v975, 97
  %v1384 = vpop.permute.xlu0 %1383
  %1385 = vrot.lane.b32.xlu0 %v1312, 97
  %v1386 = vpop.permute.xlu0 %1385
  %1387 = vrot.lane.b32.xlu0 %v1311, 97
  %v1388 = vpop.permute.xlu0 %1387
  %1389 = vrot.lane.b32.xlu0 %v1320, 97
  %v1390 = vpop.permute.xlu0 %1389
  %1391 = vrot.lane.b32.xlu0 %v1318, 97
  %v1392 = vpop.permute.xlu0 %1391
  %1393 = vrot.lane.b32.xlu0 %v1327, 97
  %v1394 = vpop.permute.xlu0 %1393
  %1395 = vrot.lane.b32.xlu0 %v1326, 97
  %v1396 = vpop.permute.xlu0 %1395
  %1397 = vrot.lane.b32.xlu0 %v1334, 97
  %v1398 = vpop.permute.xlu0 %1397
  %1399 = vrot.lane.b32.xlu0 %v1333, 97
  %v1400 = vpop.permute.xlu0 %1399
  %1401 = vrot.lane.b32.xlu0 %v1342, 97
  %v1402 = vpop.permute.xlu0 %1401
  %1403 = vrot.lane.b32.xlu0 %v1340, 97
  %v1404 = vpop.permute.xlu0 %1403
  %1405 = vrot.lane.b32.xlu0 %v1349, 97
  %v1406 = vpop.permute.xlu0 %1405
  %1407 = vrot.lane.b32.xlu0 %v1348, 97
  %v1408 = vpop.permute.xlu0 %1407
  %1409 = vrot.lane.b32.xlu0 %v1356, 97
  %v1410 = vpop.permute.xlu0 %1409
  %1411 = vrot.lane.b32.xlu0 %v1355, 97
  %v1412 = vpop.permute.xlu0 %1411
  %1413 = vrot.lane.b32.xlu0 %v1364, 97
  %v1414 = vpop.permute.xlu0 %1413
  %1415 = vrot.lane.b32.xlu0 %v1362, 97
  %v1416 = vpop.permute.xlu0 %1415
  %1417 = vrot.lane.b32.xlu0 %v1371, 97
  %v1418 = vpop.permute.xlu0 %1417
  %1419 = vrot.lane.b32.xlu0 %v1370, 97
  %v1420 = vpop.permute.xlu0 %1419
  %1421 = vrot.lane.b32.xlu0 %v1378, 97
  %v1422 = vpop.permute.xlu0 %1421
  %1423 = vrot.lane.b32.xlu0 %v1377, 97
  %v1424 = vpop.permute.xlu0 %1423
  %vm1425 = vcmask 793600
  %v1426 = vsel %vm1425, %v1382, %v1384
  %v1427 = vsel %vm1425, %v1386, %v1388
  %v1428 = vsel %vm1425, %v1390, %v1392
  %v1429 = vsel %vm1425, %v1394, %v1396
  %v1430 = vsel %vm1425, %v1398, %v1400
  %v1431 = vsel %vm1425, %v1402, %v1404
  %v1432 = vsel %vm1425, %v1406, %v1408
  %v1433 = vsel %vm1425, %v1410, %v1412
  %v1434 = vsel %vm1425, %v1414, %v1416
  %v1435 = vsel %vm1425, %v1418, %v1420
  %v1436 = vsel %vm1425, %v1422, %v1424
  %v1437 = vld [vmem:[%s3] sm:$0xff]
  %v1438 = vld [vmem:[%s3 + $0x8] sm:$0xff]
  %v1439 = vld [vmem:[%s3 + $0x10] sm:$0xff]
  %v1440 = vld [vmem:[%s3 + $0x18] sm:$0xff]
  %v1441 = vld [vmem:[%s4] sm:$0xff]
  %v1442 = vld [vmem:[%s4 + $0x8] sm:$0xff]
  %1444 = vset.pattern.permute.xlu0 0
  %1445 = vperm.xlu0 %1444, %v1441
  %v1446 = vpop.permute.xlu0 %1445
  %1449 = vset.pattern.permute.xlu0 0
  %1450 = vperm.xlu0 %1449, %v1442
  %v1451 = vpop.permute.xlu0 %1450
  %1455 = vrot.lane.b32.xlu0 %v639, 121
  %v1456 = vpop.permute.xlu0 %1455
  %1457 = vrot.lane.b32.xlu0 %v640, 121
  %v1458 = vpop.permute.xlu0 %1457
  %1459 = vrot.lane.b32.xlu0 %v1193, 121
  %v1460 = vpop.permute.xlu0 %1459
  %1461 = vrot.lane.b32.xlu0 %v1191, 121
  %v1462 = vpop.permute.xlu0 %1461
  %1463 = vrot.lane.b32.xlu0 %v1201, 121
  %v1464 = vpop.permute.xlu0 %1463
  %1465 = vrot.lane.b32.xlu0 %v1199, 121
  %v1466 = vpop.permute.xlu0 %1465
  %1467 = vrot.lane.b32.xlu0 %v1209, 121
  %v1468 = vpop.permute.xlu0 %1467
  %1469 = vrot.lane.b32.xlu0 %v1207, 121
  %v1470 = vpop.permute.xlu0 %1469
  %1471 = vrot.lane.b32.xlu0 %v1217, 121
  %v1472 = vpop.permute.xlu0 %1471
  %1473 = vrot.lane.b32.xlu0 %v1215, 121
  %v1474 = vpop.permute.xlu0 %1473
  %1475 = vrot.lane.b32.xlu0 %v1225, 121
  %v1476 = vpop.permute.xlu0 %1475
  %1477 = vrot.lane.b32.xlu0 %v1223, 121
  %v1478 = vpop.permute.xlu0 %1477
  %1479 = vrot.lane.b32.xlu0 %v1233, 121
  %v1480 = vpop.permute.xlu0 %1479
  %1481 = vrot.lane.b32.xlu0 %v1231, 121
  %v1482 = vpop.permute.xlu0 %1481
  %1483 = vrot.lane.b32.xlu0 %v1241, 121
  %v1484 = vpop.permute.xlu0 %1483
  %1485 = vrot.lane.b32.xlu0 %v1239, 121
  %v1486 = vpop.permute.xlu0 %1485
  %1487 = vrot.lane.b32.xlu0 %v1249, 121
  %v1488 = vpop.permute.xlu0 %1487
  %1489 = vrot.lane.b32.xlu0 %v1247, 121
  %v1490 = vpop.permute.xlu0 %1489
  %1491 = vrot.lane.b32.xlu0 %v1257, 121
  %v1492 = vpop.permute.xlu0 %1491
  %1493 = vrot.lane.b32.xlu0 %v1255, 121
  %v1494 = vpop.permute.xlu0 %1493
  %1495 = vrot.lane.b32.xlu0 %v1265, 121
  %v1496 = vpop.permute.xlu0 %1495
  %1497 = vrot.lane.b32.xlu0 %v1263, 121
  %v1498 = vpop.permute.xlu0 %1497
  %1499 = vrot.lane.b32.xlu0 %v1273, 121
  %v1500 = vpop.permute.xlu0 %1499
  %1501 = vrot.lane.b32.xlu0 %v1271, 121
  %v1502 = vpop.permute.xlu0 %1501
  %1503 = vrot.lane.b32.xlu0 %v1281, 121
  %v1504 = vpop.permute.xlu0 %1503
  %1505 = vrot.lane.b32.xlu0 %v1279, 121
  %v1506 = vpop.permute.xlu0 %1505
  %1507 = vrot.lane.b32.xlu0 %v1289, 121
  %v1508 = vpop.permute.xlu0 %1507
  %1509 = vrot.lane.b32.xlu0 %v1287, 121
  %v1510 = vpop.permute.xlu0 %1509
  %1511 = vrot.lane.b32.xlu0 %v1297, 121
  %v1512 = vpop.permute.xlu0 %1511
  %1513 = vrot.lane.b32.xlu0 %v1295, 121
  %v1514 = vpop.permute.xlu0 %1513
  %1515 = vrot.lane.b32.xlu0 %v1305, 121
  %v1516 = vpop.permute.xlu0 %1515
  %1517 = vrot.lane.b32.xlu0 %v1303, 121
  %v1518 = vpop.permute.xlu0 %1517
  %1519 = vrot.lane.b32.xlu0 %v1426, 121
  %v1520 = vpop.permute.xlu0 %1519
  %1521 = vrot.lane.b32.xlu0 %v1384, 121
  %v1522 = vpop.permute.xlu0 %1521
  %1523 = vrot.lane.b32.xlu0 %v1427, 121
  %v1524 = vpop.permute.xlu0 %1523
  %1525 = vrot.lane.b32.xlu0 %v1388, 121
  %v1526 = vpop.permute.xlu0 %1525
  %1527 = vrot.lane.b32.xlu0 %v1428, 121
  %v1528 = vpop.permute.xlu0 %1527
  %1529 = vrot.lane.b32.xlu0 %v1392, 121
  %v1530 = vpop.permute.xlu0 %1529
  %1531 = vrot.lane.b32.xlu0 %v1429, 121
  %v1532 = vpop.permute.xlu0 %1531
  %1533 = vrot.lane.b32.xlu0 %v1396, 121
  %v1534 = vpop.permute.xlu0 %1533
  %1535 = vrot.lane.b32.xlu0 %v1430, 121
  %v1536 = vpop.permute.xlu0 %1535
  %1537 = vrot.lane.b32.xlu0 %v1400, 121
  %v1538 = vpop.permute.xlu0 %1537
  %1539 = vrot.lane.b32.xlu0 %v1431, 121
  %v1540 = vpop.permute.xlu0 %1539
  %1541 = vrot.lane.b32.xlu0 %v1404, 121
  %v1542 = vpop.permute.xlu0 %1541
  %1543 = vrot.lane.b32.xlu0 %v1432, 121
  %v1544 = vpop.permute.xlu0 %1543
  %1545 = vrot.lane.b32.xlu0 %v1408, 121
  %v1546 = vpop.permute.xlu0 %1545
  %1547 = vrot.lane.b32.xlu0 %v1433, 121
  %v1548 = vpop.permute.xlu0 %1547
  %1549 = vrot.lane.b32.xlu0 %v1412, 121
  %v1550 = vpop.permute.xlu0 %1549
  %1551 = vrot.lane.b32.xlu0 %v1434, 121
  %v1552 = vpop.permute.xlu0 %1551
  %1553 = vrot.lane.b32.xlu0 %v1416, 121
  %v1554 = vpop.permute.xlu0 %1553
  %1555 = vrot.lane.b32.xlu0 %v1435, 121
  %v1556 = vpop.permute.xlu0 %1555
  %1557 = vrot.lane.b32.xlu0 %v1420, 121
  %v1558 = vpop.permute.xlu0 %1557
  %1559 = vrot.lane.b32.xlu0 %v1436, 121
  %v1560 = vpop.permute.xlu0 %1559
  %1561 = vrot.lane.b32.xlu0 %v1424, 121
  %v1562 = vpop.permute.xlu0 %1561
  %v1563 = vsel %vm1216, %v1456, %v1458
  %v1564 = vsel %vm1216, %v1460, %v1462
  %v1565 = vsel %vm1216, %v1464, %v1466
  %v1566 = vsel %vm1216, %v1468, %v1470
  %v1567 = vsel %vm1216, %v1472, %v1474
  %v1568 = vsel %vm1216, %v1476, %v1478
  %v1569 = vsel %vm1216, %v1480, %v1482
  %v1570 = vsel %vm1216, %v1484, %v1486
  %v1571 = vsel %vm1216, %v1488, %v1490
  %v1572 = vsel %vm1216, %v1492, %v1494
  %v1573 = vsel %vm1216, %v1496, %v1498
  %v1574 = vsel %vm1216, %v1500, %v1502
  %v1575 = vsel %vm1216, %v1504, %v1506
  %v1576 = vsel %vm1216, %v1508, %v1510
  %v1577 = vsel %vm1216, %v1512, %v1514
  %v1578 = vsel %vm1216, %v1516, %v1518
  %v1579 = vsel %vm1216, %v1520, %v1522
  %v1580 = vsel %vm1216, %v1524, %v1526
  %v1581 = vsel %vm1216, %v1528, %v1530
  %v1582 = vsel %vm1216, %v1532, %v1534
  %v1583 = vsel %vm1216, %v1536, %v1538
  %v1584 = vsel %vm1216, %v1540, %v1542
  %v1585 = vsel %vm1216, %v1544, %v1546
  %v1586 = vsel %vm1216, %v1548, %v1550
  %v1587 = vsel %vm1216, %v1552, %v1554
  %v1588 = vsel %vm1216, %v1556, %v1558
  %v1589 = vsel %vm1216, %v1560, %v1562
  %vm1644 = vcmask 719872
  %v1646 = vsel %vm1644, %v1438, 0
  %v1649 = vsel %vm1644, %v1440, 0
  %1651 = vmatprep.subr.mxu0 %v1458
  %1652 = vmatpush1.msra.mxu0 %v1563
  %1653 = vmatprep.subr.mxu0 %v1462
  %1654 = vmatpush1.msra.mxu0 %v1564
  %1655 = vmatprep.subr.mxu0 %v1466
  %1656 = vmatpush1.msra.mxu0 %v1565
  %1657 = vmatprep.subr.mxu0 %v1470
  %1658 = vmatpush1.msra.mxu0 %v1566
  %1659 = vmatprep.subr.mxu0 %v1474
  %1660 = vmatpush1.msra.mxu0 %v1567
  %1661 = vmatprep.subr.mxu0 %v1478
  %1662 = vmatpush1.msra.mxu0 %v1568
  %1663 = vmatprep.subr.mxu0 %v1482
  %1664 = vmatpush1.msra.mxu0 %v1569
  %1665 = vmatprep.subr.mxu0 %v1486
  %1666 = vmatpush1.msra.mxu0 %v1570
  %1667 = vmatprep.subr.mxu0 %v1490
  %1668 = vmatpush1.msra.mxu0 %v1571
  %1669 = vmatprep.subr.mxu0 %v1494
  %1670 = vmatpush1.msra.mxu0 %v1572
  %1671 = vmatprep.subr.mxu0 %v1498
  %1672 = vmatpush1.msra.mxu0 %v1573
  %1673 = vmatprep.subr.mxu0 %v1502
  %1674 = vmatpush1.msra.mxu0 %v1574
  %1675 = vmatprep.subr.mxu0 %v1506
  %1676 = vmatpush1.msra.mxu0 %v1575
  %1677 = vmatprep.subr.mxu0 %v1510
  %1678 = vmatpush1.msra.mxu0 %v1576
  %1679 = vmatprep.subr.mxu0 %v1514
  %1680 = vmatpush1.msra.mxu0 %v1577
  %1681 = vmatprep.subr.mxu0 %v1518
  %1682 = vmatpush1.msra.mxu0 %v1578
  %1683 = vmatprep.subr.mxu0 %v1522
  %1684 = vmatpush1.msra.mxu0 %v1579
  %1685 = vmatprep.subr.mxu0 %v1526
  %1686 = vmatpush1.msra.mxu0 %v1580
  %1687 = vmatprep.subr.mxu0 %v1530
  %1688 = vmatpush1.msra.mxu0 %v1581
  %1689 = vmatprep.subr.mxu0 %v1534
  %1690 = vmatpush1.msra.mxu0 %v1582
  %1691 = vmatprep.subr.mxu0 %v1538
  %1692 = vmatpush1.msra.mxu0 %v1583
  %1693 = vmatprep.subr.mxu0 %v1542
  %1694 = vmatpush1.msra.mxu0 %v1584
  %1695 = vmatprep.subr.mxu0 %v1546
  %1696 = vmatpush1.msra.mxu0 %v1585
  %1697 = vmatprep.subr.mxu0 %v1550
  %1698 = vmatpush1.msra.mxu0 %v1586
  %1699 = vmatprep.subr.mxu0 %v1554
  %1700 = vmatpush1.msra.mxu0 %v1587
  %1701 = vmatprep.subr.mxu0 %v1558
  %1702 = vmatpush1.msra.mxu0 %v1588
  %1703 = vmatprep.subr.mxu0 %v1562
  %1704 = vmatpush1.msra.mxu0 %v1589
  %1705 = vmatprep.subr.mxu0 0.0
  %1706 = vmatpush1.msra.mxu0 0.0
  %1707 = vmatprep.subr.mxu0 0.0
  %1708 = vmatpush1.msra.mxu0 0.0
  %1709 = vmatprep.subr.mxu0 0.0
  %1710 = vmatpush1.msra.mxu0 0.0
  %1711 = vmatprep.subr.mxu0 0.0
  %1712 = vmatpush1.msra.mxu0 0.0
  %1713 = vmatprep.subr.mxu0 0.0
  %1714 = vmatpush1.msra.mxu0 0.0
  %1715 = vmatprep.mubr.f32.mxu0 %v1646
  %1716 = vmatmul.mubr.f32.gmra.mrb[0].mxu0 %v1437
  %v1717 = vpop.f32.mrb[0].mxu0
  %v1718 = vadd.f32 %v1446, %v1717
  %v1719 = vpop.f32.mrb[0].mxu0
  %v1720 = vadd.f32 %v1446, %v1719
  %1721 = vmatprep.mubr.f32.mxu0 %v1649
  %1722 = vmatmul.mubr.f32.gmra.mrb[0].mxu0 %v1439
  %v1723 = vpop.f32.mrb[0].mxu0
  %v1724 = vadd.f32 %v1451, %v1723
  %v1725 = vpop.f32.mrb[0].mxu0
  %v1726 = vadd.f32 %v1451, %v1725
  %1727 = vdwg.mxu0
  %v1728 = vmax.f32 %v1718, 0.0
  %v1729 = vmax.f32 %v1720, 0.0
  %v1730 = vmax.f32 %v1724, 0.0
  %v1731 = vmax.f32 %v1726, 0.0
  %1736 = vrot.lane.b32.xlu0 %v1728, 32
  %v1737 = vpop.permute.xlu0 %1736
  %1738 = vrot.lane.b32.xlu0 %v1729, 32
  %v1739 = vpop.permute.xlu0 %1738
  %1740 = vrot.lane.b32.xlu0 %v1730, 32
  %v1741 = vpop.permute.xlu0 %1740
  %1742 = vrot.lane.b32.xlu0 %v1731, 32
  %v1743 = vpop.permute.xlu0 %1742
  %v1744 = vsel %vm91, %v1737, %v1739
  %v1745 = vsel %vm91, %v1741, %v1743
  %v1750 = vsel %vm91, 0.0, %v1737
  %v1751 = vsel %vm91, 0.0, %v1741
  %v1752 = vsel %vm581, %v1744, 0.0
  %v1753 = vsel %vm581, %v1745, 0.0
  %1758 = vrot.lane.b32.xlu0 %v1750, 95
  %v1759 = vpop.permute.xlu0 %1758
  %1760 = vrot.lane.b32.xlu0 %v1752, 95
  %v1761 = vpop.permute.xlu0 %1760
  %1762 = vrot.lane.b32.xlu0 %v1751, 95
  %v1763 = vpop.permute.xlu0 %1762
  %1764 = vrot.lane.b32.xlu0 %v1753, 95
  %v1765 = vpop.permute.xlu0 %1764
  %vm1766 = vcmask 777216
  %v1767 = vsel %vm1766, %v1759, %v1761
  %v1768 = vsel %vm1766, %v1763, %v1765
  %v1773 = vmax.f32 %v1728, %v1767
  %v1774 = vmax.f32 %v1729, %v1761
  %v1775 = vmax.f32 %v1730, %v1768
  %v1776 = vmax.f32 %v1731, %v1765
  %1777 = vrot.lane.b32.xlu0 %v1750, 94
  %v1778 = vpop.permute.xlu0 %1777
  %1779 = vrot.lane.b32.xlu0 %v1752, 94
  %v1780 = vpop.permute.xlu0 %1779
  %1781 = vrot.lane.b32.xlu0 %v1751, 94
  %v1782 = vpop.permute.xlu0 %1781
  %1783 = vrot.lane.b32.xlu0 %v1753, 94
  %v1784 = vpop.permute.xlu0 %1783
  %vm1785 = vcmask 769024
  %v1786 = vsel %vm1785, %v1778, %v1780
  %v1787 = vsel %vm1785, %v1782, %v1784
  %v1792 = vmax.f32 %v1773, %v1786
  %v1793 = vmax.f32 %v1774, %v1780
  %v1794 = vmax.f32 %v1775, %v1787
  %v1795 = vmax.f32 %v1776, %v1784
  %1796 = vrot.lane.b32.xlu0 %v1728, 31
  %v1797 = vpop.permute.xlu0 %1796
  %1798 = vrot.lane.b32.xlu0 %v1729, 31
  %v1799 = vpop.permute.xlu0 %1798
  %1800 = vrot.lane.b32.xlu0 %v1730, 31
  %v1801 = vpop.permute.xlu0 %1800
  %1802 = vrot.lane.b32.xlu0 %v1731, 31
  %v1803 = vpop.permute.xlu0 %1802
  %v1804 = vsel %vm887, %v1797, %v1799
  %v1805 = vsel %vm887, %v1801, %v1803
  %v1810 = vmax.f32 %v1750, %v1797
  %v1811 = vmax.f32 %v1752, %v1804
  %v1812 = vmax.f32 %v1751, %v1801
  %v1813 = vmax.f32 %v1753, %v1805
  %1814 = vrot.lane.b32.xlu0 %v1750, 126
  %v1815 = vpop.permute.xlu0 %1814
  %1816 = vrot.lane.b32.xlu0 %v1752, 126
  %v1817 = vpop.permute.xlu0 %1816
  %1818 = vrot.lane.b32.xlu0 %v1751, 126
  %v1819 = vpop.permute.xlu0 %1818
  %1820 = vrot.lane.b32.xlu0 %v1753, 126
  %v1821 = vpop.permute.xlu0 %1820
  %v1822 = vsel %vm1200, %v1815, %v1817
  %v1823 = vsel %vm1200, %v1819, %v1821
  %v1828 = vmax.f32 %v1810, %v1822
  %v1829 = vmax.f32 %v1811, %v1817
  %v1830 = vmax.f32 %v1812, %v1823
  %v1831 = vmax.f32 %v1813, %v1821
  %1832 = vrot.lane.b32.xlu0 %v1750, 127
  %v1833 = vpop.permute.xlu0 %1832
  %1834 = vrot.lane.b32.xlu0 %v1752, 127
  %v1835 = vpop.permute.xlu0 %1834
  %1836 = vrot.lane.b32.xlu0 %v1751, 127
  %v1837 = vpop.permute.xlu0 %1836
  %1838 = vrot.lane.b32.xlu0 %v1753, 127
  %v1839 = vpop.permute.xlu0 %1838
  %v1840 = vsel %vm1192, %v1833, %v1835
  %v1841 = vsel %vm1192, %v1837, %v1839
  %v1846 = vmax.f32 %v1750, %v1840
  %v1847 = vmax.f32 %v1752, %v1835
  %v1848 = vmax.f32 %v1751, %v1841
  %v1849 = vmax.f32 %v1753, %v1839
  %1850 = vrot.lane.b32.xlu0 %v1728, 30
  %v1851 = vpop.permute.xlu0 %1850
  %1852 = vrot.lane.b32.xlu0 %v1729, 30
  %v1853 = vpop.permute.xlu0 %1852
  %1854 = vrot.lane.b32.xlu0 %v1730, 30
  %v1855 = vpop.permute.xlu0 %1854
  %1856 = vrot.lane.b32.xlu0 %v1731, 30
  %v1857 = vpop.permute.xlu0 %1856
  %vm1858 = vcmask 244736
  %v1859 = vsel %vm1858, %v1851, %v1853
  %v1860 = vsel %vm1858, %v1855, %v1857
  %v1865 = vmax.f32 %v1846, %v1851
  %v1866 = vmax.f32 %v1847, %v1859
  %v1867 = vmax.f32 %v1848, %v1855
  %v1868 = vmax.f32 %v1849, %v1860
  %v1869 = vld [vmem:[%s6] ss:$4 sm:$0x3]
  %s1870 = scalar_lea.vmem %s6, 1
  %v1871 = vld [vmem:[%s1870] ss:$4 sm:$0x3]
  %s1872 = scalar_lea.vmem %s6, 2
  %v1873 = vld [vmem:[%s1872] ss:$4 sm:$0x3]
  %v1875 = vlaneseq
  %v1876 = vshrl.u32 %v1875, 7
  %v1877 = vsub.s32 0, %v1876
  %v1878 = vrot.slane %v1869, %v1877
  %v1879 = vlaneseq
  %v1880 = vshrl.u32 %v1879, 7
  %v1881 = vsub.s32 1, %v1880
  %v1882 = vrot.slane %v1869, %v1881
  %v1885 = vmul.f32 %v1792, %v1878
  %v1886 = vmul.f32 %v1793, %v1882
  %v1887 = vmul.f32 %v1794, %v1878
  %v1888 = vmul.f32 %v1795, %v1882
  %v1890 = vlaneseq
  %v1891 = vshrl.u32 %v1890, 7
  %v1892 = vsub.s32 0, %v1891
  %v1893 = vrot.slane %v1871, %v1892
  %v1894 = vlaneseq
  %v1895 = vshrl.u32 %v1894, 7
  %v1896 = vsub.s32 1, %v1895
  %v1897 = vrot.slane %v1871, %v1896
  %1898 = vrot.lane.b32.xlu0 %v1893, 31
  %v1899 = vpop.permute.xlu0 %1898
  %1900 = vrot.lane.b32.xlu0 %v1897, 31
  %v1901 = vpop.permute.xlu0 %1900
  %v1902 = vsel %vm887, %v1899, %v1901
  %v1905 = vmul.f32 %v1828, %v1899
  %v1906 = vmul.f32 %v1829, %v1902
  %v1907 = vmul.f32 %v1830, %v1899
  %v1908 = vmul.f32 %v1831, %v1902
  %1913 = vrot.lane.b32.xlu0 %v1905, 97
  %v1914 = vpop.permute.xlu0 %1913
  %1915 = vrot.lane.b32.xlu0 %v1906, 97
  %v1916 = vpop.permute.xlu0 %1915
  %1917 = vrot.lane.b32.xlu0 %v1907, 97
  %v1918 = vpop.permute.xlu0 %1917
  %1919 = vrot.lane.b32.xlu0 %v1908, 97
  %v1920 = vpop.permute.xlu0 %1919
  %v1921 = vsel %vm1425, %v1914, %v1916
  %v1922 = vsel %vm1425, %v1918, %v1920
  %v1927 = vadd.f32 %v1885, %v1921
  %v1928 = vadd.f32 %v1886, %v1916
  %v1929 = vadd.f32 %v1887, %v1922
  %v1930 = vadd.f32 %v1888, %v1920
  %v1932 = vlaneseq
  %v1933 = vshrl.u32 %v1932, 7
  %v1934 = vsub.s32 0, %v1933
  %v1935 = vrot.slane %v1873, %v1934
  %v1936 = vlaneseq
  %v1937 = vshrl.u32 %v1936, 7
  %v1938 = vsub.s32 1, %v1937
  %v1939 = vrot.slane %v1873, %v1938
  %1940 = vrot.lane.b32.xlu0 %v1935, 30
  %v1941 = vpop.permute.xlu0 %1940
  %1942 = vrot.lane.b32.xlu0 %v1939, 30
  %v1943 = vpop.permute.xlu0 %1942
  %v1944 = vsel %vm1858, %v1941, %v1943
  %v1947 = vmul.f32 %v1865, %v1941
  %v1948 = vmul.f32 %v1866, %v1944
  %v1949 = vmul.f32 %v1867, %v1941
  %v1950 = vmul.f32 %v1868, %v1944
  %1955 = vrot.lane.b32.xlu0 %v1947, 98
  %v1956 = vpop.permute.xlu0 %1955
  %1957 = vrot.lane.b32.xlu0 %v1948, 98
  %v1958 = vpop.permute.xlu0 %1957
  %1959 = vrot.lane.b32.xlu0 %v1949, 98
  %v1960 = vpop.permute.xlu0 %1959
  %1961 = vrot.lane.b32.xlu0 %v1950, 98
  %v1962 = vpop.permute.xlu0 %1961
  %v1963 = vsel %vm1304, %v1956, %v1958
  %v1964 = vsel %vm1304, %v1960, %v1962
  %v1969 = vadd.f32 %v1927, %v1963
  %v1970 = vadd.f32 %v1928, %v1958
  %v1971 = vadd.f32 %v1929, %v1964
  %v1972 = vadd.f32 %v1930, %v1962
  %v1973 = vld [vmem:[%s7] sm:$0xff]
  %v1974 = vld [vmem:[%s7 + $0x8] sm:$0xff]
  %v1975 = vld [vmem:[%s7 + $0x10] sm:$0xff]
  %v1976 = vld [vmem:[%s8] sm:$0xff]
  %v1977 = vld [vmem:[%s8 + $0x8] sm:$0xff]
  %v1978 = vld [vmem:[%s8 + $0x10] sm:$0xff]
  %1980 = vset.pattern.permute.xlu0 0
  %1981 = vperm.xlu0 %1980, %v1976
  %v1982 = vpop.permute.xlu0 %1981
  %1985 = vset.pattern.permute.xlu0 0
  %1986 = vperm.xlu0 %1985, %v1977
  %v1987 = vpop.permute.xlu0 %1986
  %1990 = vset.pattern.permute.xlu0 0
  %1991 = vperm.xlu0 %1990, %v1978
  %v1992 = vpop.permute.xlu0 %1991
  %v1995 = vsel %vm602, %v1973, 0
  %v1998 = vsel %vm602, %v1974, 0
  %v2001 = vsel %vm602, %v1975, 0
  %2003 = vmatprep.subr.mxu0 %v1970
  %2004 = vmatpush1.msra.mxu0 %v1969
  %2005 = vmatprep.subr.mxu0 %v1972
  %2006 = vmatpush1.msra.mxu0 %v1971
  %2007 = vmatprep.subr.mxu0 0.0
  %2008 = vmatpush1.msra.mxu0 0.0
  %2009 = vmatprep.subr.mxu0 0.0
  %2010 = vmatpush1.msra.mxu0 0.0
  %2011 = vmatprep.subr.mxu0 0.0
  %2012 = vmatpush1.msra.mxu0 0.0
  %2013 = vmatprep.subr.mxu0 0.0
  %2014 = vmatpush1.msra.mxu0 0.0
  %2015 = vmatprep.subr.mxu0 0.0
  %2016 = vmatpush1.msra.mxu0 0.0
  %2017 = vmatprep.subr.mxu0 0.0
  %2018 = vmatpush1.msra.mxu0 0.0
  %2019 = vmatprep.subr.mxu0 0.0
  %2020 = vmatpush1.msra.mxu0 0.0
  %2021 = vmatprep.subr.mxu0 0.0
  %2022 = vmatpush1.msra.mxu0 0.0
  %2023 = vmatprep.subr.mxu0 0.0
  %2024 = vmatpush1.msra.mxu0 0.0
  %2025 = vmatprep.subr.mxu0 0.0
  %2026 = vmatpush1.msra.mxu0 0.0
  %2027 = vmatprep.subr.mxu0 0.0
  %2028 = vmatpush1.msra.mxu0 0.0
  %2029 = vmatprep.subr.mxu0 0.0
  %2030 = vmatpush1.msra.mxu0 0.0
  %2031 = vmatprep.subr.mxu0 0.0
  %2032 = vmatpush1.msra.mxu0 0.0
  %2033 = vmatprep.subr.mxu0 0.0
  %2034 = vmatpush1.msra.mxu0 0.0
  %2035 = vmatprep.subr.mxu0 0.0
  %2036 = vmatpush1.msra.mxu0 0.0
  %2037 = vmatprep.subr.mxu0 0.0
  %2038 = vmatpush1.msra.mxu0 0.0
  %2039 = vmatprep.subr.mxu0 0.0
  %2040 = vmatpush1.msra.mxu0 0.0
  %2041 = vmatprep.subr.mxu0 0.0
  %2042 = vmatpush1.msra.mxu0 0.0
  %2043 = vmatprep.subr.mxu0 0.0
  %2044 = vmatpush1.msra.mxu0 0.0
  %2045 = vmatprep.subr.mxu0 0.0
  %2046 = vmatpush1.msra.mxu0 0.0
  %2047 = vmatprep.subr.mxu0 0.0
  %2048 = vmatpush1.msra.mxu0 0.0
  %2049 = vmatprep.subr.mxu0 0.0
  %2050 = vmatpush1.msra.mxu0 0.0
  %2051 = vmatprep.subr.mxu0 0.0
  %2052 = vmatpush1.msra.mxu0 0.0
  %2053 = vmatprep.subr.mxu0 0.0
  %2054 = vmatpush1.msra.mxu0 0.0
  %2055 = vmatprep.subr.mxu0 0.0
  %2056 = vmatpush1.msra.mxu0 0.0
  %2057 = vmatprep.subr.mxu0 0.0
  %2058 = vmatpush1.msra.mxu0 0.0
  %2059 = vmatprep.subr.mxu0 0.0
  %2060 = vmatpush1.msra.mxu0 0.0
  %2061 = vmatprep.subr.mxu0 0.0
  %2062 = vmatpush1.msra.mxu0 0.0
  %2063 = vmatprep.subr.mxu0 0.0
  %2064 = vmatpush1.msra.mxu0 0.0
  %2065 = vmatprep.subr.mxu0 0.0
  %2066 = vmatpush1.msra.mxu0 0.0
  %2067 = vmatprep.mubr.f32.mxu0 0.0
  %2068 = vmatmul.mubr.f32.gmra.mrb[0].mxu0 %v1995
  %v2069 = vpop.f32.mrb[0].mxu0
  %v2070 = vadd.f32 %v1982, %v2069
  %v2071 = vpop.f32.mrb[0].mxu0
  %v2072 = vadd.f32 %v1982, %v2071
  %2073 = vmatprep.mubr.f32.mxu0 0.0
  %2074 = vmatmul.mubr.f32.gmra.mrb[0].mxu0 %v1998
  %v2075 = vpop.f32.mrb[0].mxu0
  %v2076 = vadd.f32 %v1987, %v2075
  %v2077 = vpop.f32.mrb[0].mxu0
  %v2078 = vadd.f32 %v1987, %v2077
  %2079 = vmatprep.mubr.f32.mxu0 0.0
  %2080 = vmatmul.mubr.f32.gmra.mrb[0].mxu0 %v2001
  %v2081 = vpop.f32.mrb[0].mxu0
  %v2082 = vadd.f32 %v1992, %v2081
  %v2083 = vpop.f32.mrb[0].mxu0
  %v2084 = vadd.f32 %v1992, %v2083
  %2085 = vdwg.mxu0
  %v2086 = vmax.f32 %v2070, 0.0
  %v2087 = vmax.f32 %v2072, 0.0
  %v2088 = vmax.f32 %v2076, 0.0
  %v2089 = vmax.f32 %v2078, 0.0
  %v2090 = vmax.f32 %v2082, 0.0
  %v2091 = vmax.f32 %v2084, 0.0
  %v2092 = vmul.f32 %v2086, %v1878
  %v2093 = vmul.f32 %v2087, %v1882
  %v2096 = vmul.f32 %v2088, %v1893
  %v2097 = vmul.f32 %v2089, %v1897
  %v2098 = vadd.f32 %v2092, %v2096
  %v2099 = vadd.f32 %v2093, %v2097
  %v2102 = vmul.f32 %v2090, %v1935
  %v2103 = vmul.f32 %v2091, %v1939
  %v2104 = vadd.f32 %v2098, %v2102
  %v2105 = vadd.f32 %v2099, %v2103
  %v2106 = vld [vmem:[%s9] sm:$0xff]
  %v2107 = vld [vmem:[%s9 + $0x8] sm:$0x1]
  %v2108 = vld [vmem:[#allocation2] sm:$0x1]
  %v2110 = vlaneseq
  %v2111 = vshrl.u32 %v2110, 7
  %v2112 = vsub.s32 0, %v2111
  %v2113 = vrot.slane %v2108, %v2112
  %2114 = vset.pattern.permute.xlu0 0
  %2115 = vperm.xlu0 %2114, %v2113
  %v2116 = vpop.permute.xlu0 %2115
  %v2119 = vsel %vm656, %v2106, 0
  %v2122 = vsel %vm656, %v2107, 0
  %2124 = vmatprep.subr.mxu0 %v2105
  %2125 = vmatpush1.msra.mxu0 %v2104
  %2126 = vmatprep.subr.mxu0 0.0
  %2127 = vmatpush1.msra.mxu0 0.0
  %2128 = vmatprep.subr.mxu0 0.0
  %2129 = vmatpush1.msra.mxu0 0.0
  %2130 = vmatprep.subr.mxu0 0.0
  %2131 = vmatpush1.msra.mxu0 0.0
  %2132 = vmatprep.subr.mxu0 0.0
  %2133 = vmatpush1.msra.mxu0 0.0
  %2134 = vmatprep.subr.mxu0 0.0
  %2135 = vmatpush1.msra.mxu0 0.0
  %2136 = vmatprep.subr.mxu0 0.0
  %2137 = vmatpush1.msra.mxu0 0.0
  %2138 = vmatprep.subr.mxu0 0.0
  %2139 = vmatpush1.msra.mxu0 0.0
  %2140 = vmatprep.subr.mxu0 0.0
  %2141 = vmatpush1.msra.mxu0 0.0
  %2142 = vmatprep.subr.mxu0 0.0
  %2143 = vmatpush1.msra.mxu0 0.0
  %2144 = vmatprep.subr.mxu0 0.0
  %2145 = vmatpush1.msra.mxu0 0.0
  %2146 = vmatprep.subr.mxu0 0.0
  %2147 = vmatpush1.msra.mxu0 0.0
  %2148 = vmatprep.subr.mxu0 0.0
  %2149 = vmatpush1.msra.mxu0 0.0
  %2150 = vmatprep.subr.mxu0 0.0
  %2151 = vmatpush1.msra.mxu0 0.0
  %2152 = vmatprep.subr.mxu0 0.0
  %2153 = vmatpush1.msra.mxu0 0.0
  %2154 = vmatprep.subr.mxu0 0.0
  %2155 = vmatpush1.msra.mxu0 0.0
  %2156 = vmatprep.subr.mxu0 0.0
  %2157 = vmatpush1.msra.mxu0 0.0
  %2158 = vmatprep.subr.mxu0 0.0
  %2159 = vmatpush1.msra.mxu0 0.0
  %2160 = vmatprep.subr.mxu0 0.0
  %2161 = vmatpush1.msra.mxu0 0.0
  %2162 = vmatprep.subr.mxu0 0.0
  %2163 = vmatpush1.msra.mxu0 0.0
  %2164 = vmatprep.subr.mxu0 0.0
  %2165 = vmatpush1.msra.mxu0 0.0
  %2166 = vmatprep.subr.mxu0 0.0
  %2167 = vmatpush1.msra.mxu0 0.0
  %2168 = vmatprep.subr.mxu0 0.0
  %2169 = vmatpush1.msra.mxu0 0.0
  %2170 = vmatprep.subr.mxu0 0.0
  %2171 = vmatpush1.msra.mxu0 0.0
  %2172 = vmatprep.subr.mxu0 0.0
  %2173 = vmatpush1.msra.mxu0 0.0
  %2174 = vmatprep.subr.mxu0 0.0
  %2175 = vmatpush1.msra.mxu0 0.0
  %2176 = vmatprep.subr.mxu0 0.0
  %2177 = vmatpush1.msra.mxu0 0.0
  %2178 = vmatprep.subr.mxu0 0.0
  %2179 = vmatpush1.msra.mxu0 0.0
  %2180 = vmatprep.subr.mxu0 0.0
  %2181 = vmatpush1.msra.mxu0 0.0
  %2182 = vmatprep.subr.mxu0 0.0
  %2183 = vmatpush1.msra.mxu0 0.0
  %2184 = vmatprep.subr.mxu0 0.0
  %2185 = vmatpush1.msra.mxu0 0.0
  %2186 = vmatprep.subr.mxu0 0.0
  %2187 = vmatpush1.msra.mxu0 0.0
  %2188 = vmatprep.mubr.f32.mxu0 0.0
  %2189 = vmatmul.mubr.f32.gmra.mrb[0].mxu0 %v2119
  %v2190 = vpop.f32.mrb[0].mxu0
  %v2191 = vadd.f32 %v2116, %v2190
  %v2192 = vpop.f32.mrb[0].mxu0
  %v2193 = vadd.f32 %v2116, %v2192
  %2194 = vmatprep.mubr.f32.mxu0 0.0
  %2195 = vmatmul.mubr.f32.gmra.mrb[0].mxu0 %v2122
  %v2196 = vpop.f32.mrb[0].mxu0
  %v2197 = vadd.f32 %v2116, %v2196
  %v2198 = vpop.f32.mrb[0].mxu0
  %v2199 = vadd.f32 %v2116, %v2198
  %2200 = vdwg.mxu0
  %v2201 = vxor.u32 %v2191, 2147483648
  %v2202 = vxor.u32 %v2193, 2147483648
  %v2203 = vxor.u32 %v2197, 2147483648
  %v2204 = vxor.u32 %v2199, 2147483648
  %v2205 = vmul.f32 %v2201, 1.442695
  %v2206 = vpow.pop %v2205
  %v2207 = vmul.f32 %v2202, 1.442695
  %v2208 = vpow.pop %v2207
  %v2209 = vmul.f32 %v2203, 1.442695
  %v2210 = vpow.pop %v2209
  %v2211 = vmul.f32 %v2204, 1.442695
  %v2212 = vpow.pop %v2211
  %v2213 = vadd.f32 %v2206, 1.0
  %v2214 = vadd.f32 %v2208, 1.0
  %v2215 = vadd.f32 %v2210, 1.0
  %v2216 = vadd.f32 %v2212, 1.0
  %v2217 = vrcp.pop %v2213
  %v2218 = vmul.f32 1.0, %v2217
  %v2219 = vrcp.pop %v2214
  %v2220 = vmul.f32 1.0, %v2219
  %v2221 = vrcp.pop %v2215
  %v2222 = vmul.f32 1.0, %v2221
  %v2223 = vrcp.pop %v2216
  %v2224 = vmul.f32 1.0, %v2223
  %2225 = vst [vmem:[%s11] sm:$0xff] %v2218
  %2226 = vst.msk [vmem:[%s11 + $0x8] sm:$0xff] %vm602, %v2220
  %2227 = vst [vmem:[%s11 + $0x10] sm:$0x1] %v2222
  %vm2228 = vcmask 122880
  %2229 = vst.msk [vmem:[%s11 + $0x18] sm:$0x1] %vm2228, %v2224
  // Predicated region
  $region46: #{cnn_ae_forward.1} parent=0 // pred_check
    _
  $region47: #{cnn_ae_forward.1} parent=0 // pred_check_branch
    %2231 = sbr.rel (0) target = $region49
  $region48: #{cnn_ae_forward.1} parent=0 // pred_region
    _
  $region49: #{cnn_ae_forward.1} parent=0 // pred_fallthru
    _
  // Predicated region
  $region50: #{cnn_ae_forward.1} parent=0 // pred_check
    _
  $region51: #{cnn_ae_forward.1} parent=0 // pred_check_branch
    %2233 = sbr.rel (0) target = $region53
  $region52: #{cnn_ae_forward.1} parent=0 // pred_region
    _
  $region53: #{cnn_ae_forward.1} parent=0 // pred_fallthru
    _

</llo_original>
